<compile_context>
chip_gen: v7x
topology: tpu7x:2x2x1
jax: 0.10.0
libtpu: 0.0.40
codegen_flags: <defaults>
</compile_context>

<pallas_src>
import jax
import jax.numpy as jnp
from jax import lax
from jax.experimental import pallas as pl
from jax.experimental.pallas import tpu as pltpu


def _round_up(x, m):
    return (x + m - 1) // m * m


def lstm_lm_kernel(x_ref, wih_ref, whh_ref, b_ref, wfc_ref, bfc_ref, out_ref):
    """Whole LSTM recurrence + final projection in one invocation.

    x_ref   : (Bp, T, E)   embedded tokens (batch-major, batch padded to 8)
    wih_ref : (E, 4H)      input->gates weights, gate order [i, f, g, o]
    whh_ref : (H, 4H)      hidden->gates weights
    b_ref   : (1, 4H)      combined gate bias (b_ih + b_hh)
    wfc_ref : (H, Vp)      final projection weight (vocab padded to 128 lanes)
    bfc_ref : (1, Vp)      final projection bias
    out_ref : (Bp, Vp)     logits
    """
    Bp, T, _ = x_ref.shape
    H4 = wih_ref.shape[-1]
    H = H4 // 4

    # Hoist the loop-invariant weight / bias loads out of the recurrence.
    wih = wih_ref[...]
    whh = whh_ref[...]
    b = b_ref[...]

    h = jnp.zeros((Bp, H), jnp.float32)
    c = jnp.zeros((Bp, H), jnp.float32)

    # T is small and static -> fully unrolled loop with static timestep slices.
    for t in range(T):
        x_t = x_ref[:, t, :]                                   # (Bp, E)
        gates = (jnp.dot(x_t, wih, preferred_element_type=jnp.float32)
                 + jnp.dot(h, whh, preferred_element_type=jnp.float32)
                 + b)                                          # (Bp, 4H)
        i = jax.nn.sigmoid(gates[:, 0 * H:1 * H])
        f = jax.nn.sigmoid(gates[:, 1 * H:2 * H])
        g = jnp.tanh(gates[:, 2 * H:3 * H])
        o = jax.nn.sigmoid(gates[:, 3 * H:4 * H])
        c = f * c + i * g
        h = o * jnp.tanh(c)

    out_ref[...] = (jnp.dot(h, wfc_ref[...],
                            preferred_element_type=jnp.float32)
                    + bfc_ref[...]).astype(out_ref.dtype)


def lstm_language_model(tokens, params):
    emb = params["embedding"]          # (V, E)
    wih = params["w_ih"]               # (4, E, H)  gate order i, f, g, o
    whh = params["w_hh"]               # (4, H, H)
    b = params["bias"]                 # (4, 1, H)  = b_ih + b_hh
    wfc = params["w_fc"]               # (H, V)
    bfc = params["b_fc"]               # (1, V)

    B, T = tokens.shape
    V, E = emb.shape
    H = whh.shape[-1]

    Bp = _round_up(B, 8)               # pad batch to the 8-sublane tile
    Vp = _round_up(V, 128)             # pad vocab to a full 128-lane width

    # Glue: embedding lookup (gather). No transpose — kernel is batch-major.
    x_emb = jnp.take(emb, tokens, axis=0).astype(jnp.float32)   # (B, T, E)
    x_p = jnp.pad(x_emb, ((0, Bp - B), (0, 0), (0, 0)))          # (Bp, T, E)

    # Repack weights: fuse the 4 gates along the lane dimension (4H = 128).
    wih_p = jnp.transpose(wih, (1, 0, 2)).reshape(E, 4 * H)      # (E, 4H)
    whh_p = jnp.transpose(whh, (1, 0, 2)).reshape(H, 4 * H)      # (H, 4H)
    b_p = jnp.transpose(b, (1, 0, 2)).reshape(1, 4 * H)          # (1, 4H)

    # Lane-dense fc: pad vocab columns with zeros, slice logits afterwards.
    wfc_p = jnp.pad(wfc, ((0, 0), (0, Vp - V)))                  # (H, Vp)
    bfc_p = jnp.pad(bfc, ((0, 0), (0, Vp - V)))                  # (1, Vp)

    vmem = pl.BlockSpec(memory_space=pltpu.MemorySpace.VMEM)
    out = pl.pallas_call(
        lstm_lm_kernel,
        out_shape=jax.ShapeDtypeStruct((Bp, Vp), jnp.float32),
        in_specs=[vmem] * 6,
        out_specs=pl.BlockSpec(memory_space=pltpu.MemorySpace.VMEM),
    )(x_p, wih_p, whh_p, b_p, wfc_p, bfc_p)

    return out[:B, :V]


def reference(tokens, params):
    """Pure-JAX reference matching PyTorch LSTM (gate order i, f, g, o)."""
    emb, wih, whh, b = (params["embedding"], params["w_ih"],
                        params["w_hh"], params["bias"])
    wfc, bfc = params["w_fc"], params["b_fc"]
    x = jnp.take(emb, tokens, axis=0)            # (B, T, E)
    B, _, _ = x.shape
    H = whh.shape[-1]

    def step(carry, x_t):
        h, c = carry

        def gate(k):
            return x_t @ wih[k] + h @ whh[k] + b[k]

        i = jax.nn.sigmoid(gate(0))
        f = jax.nn.sigmoid(gate(1))
        g = jnp.tanh(gate(2))
        o = jax.nn.sigmoid(gate(3))
        c = f * c + i * g
        h = o * jnp.tanh(c)
        return (h, c), None

    init = (jnp.zeros((B, H), jnp.float32), jnp.zeros((B, H), jnp.float32))
    (h_last, _), _ = lax.scan(step, init, jnp.transpose(x, (1, 0, 2)))
    return h_last @ wfc + bfc


if __name__ == "__main__":
    # Small shapes implied by the module: batch=2, seq=8, embed=16, hidden=32, vocab=64
    B, T = 2, 8
    V, E, H = 64, 16, 32

    key = jax.random.PRNGKey(0)
    keys = jax.random.split(key, 8)
    s = 1.0 / float(jnp.sqrt(H))
    params = {
        "embedding": jax.random.normal(keys[0], (V, E), jnp.float32),
        "w_ih": jax.random.uniform(keys[1], (4, E, H), jnp.float32, -s, s),
        "w_hh": jax.random.uniform(keys[2], (4, H, H), jnp.float32, -s, s),
        # combined bias = b_ih + b_hh (both drawn like PyTorch's default init)
        "bias": (jax.random.uniform(keys[3], (4, 1, H), jnp.float32, -s, s)
                 + jax.random.uniform(keys[4], (4, 1, H), jnp.float32, -s, s)),
        "w_fc": jax.random.uniform(keys[5], (H, V), jnp.float32, -s, s),
        "b_fc": jax.random.uniform(keys[6], (1, V), jnp.float32, -s, s),
    }
    tokens = jax.random.randint(keys[7], (B, T), 0, V, dtype=jnp.int32)

    logits = jax.block_until_ready(lstm_language_model(tokens, params))
    ref = reference(tokens, params)

    assert logits.shape == (B, V), logits.shape
    assert jnp.allclose(logits, ref, atol=1e-4, rtol=1e-4), (
        float(jnp.max(jnp.abs(logits - ref))))
    print("KERNEL_OK")
</pallas_src>

<mosaic_0001>
module attributes {stable_mosaic.version = 11 : i64} {
  func.func @lstm_lm_kernel(%arg0: memref<8x8x16xf32, #tpu.memory_space<vmem>>, %arg1: memref<16x128xf32, #tpu.memory_space<vmem>>, %arg2: memref<32x128xf32, #tpu.memory_space<vmem>>, %arg3: memref<1x128xf32, #tpu.memory_space<vmem>>, %arg4: memref<32x128xf32, #tpu.memory_space<vmem>>, %arg5: memref<1x128xf32, #tpu.memory_space<vmem>>, %arg6: memref<8x128xf32, #tpu.memory_space<vmem>>) attributes {dimension_semantics = [], scalar_prefetch = 0 : i64, scratch_operands = 0 : i64, tpu.core_type = #tpu.core_type<tc>} {
    %c0 = arith.constant 0 : index
    %c0_0 = arith.constant 0 : index
    %0 = vector.load %arg1[%c0, %c0_0] : memref<16x128xf32, #tpu.memory_space<vmem>>, vector<16x128xf32>
    %c0_1 = arith.constant 0 : index
    %c0_2 = arith.constant 0 : index
    %1 = vector.load %arg2[%c0_1, %c0_2] : memref<32x128xf32, #tpu.memory_space<vmem>>, vector<32x128xf32>
    %c0_3 = arith.constant 0 : index
    %c0_4 = arith.constant 0 : index
    %2 = vector.load %arg3[%c0_3, %c0_4] : memref<1x128xf32, #tpu.memory_space<vmem>>, vector<1x128xf32>
    %cst = arith.constant 0.000000e+00 : f32
    %3 = vector.broadcast %cst : f32 to vector<8x32xf32>
    %cst_5 = arith.constant 0.000000e+00 : f32
    %4 = vector.broadcast %cst_5 : f32 to vector<8x32xf32>
    %c0_6 = arith.constant 0 : index
    %c0_7 = arith.constant 0 : index
    %c0_8 = arith.constant 0 : index
    %5 = vector.load %arg0[%c0_6, %c0_7, %c0_8] : memref<8x8x16xf32, #tpu.memory_space<vmem>>, vector<8x1x16xf32>
    %6 = vector.shape_cast %5 : vector<8x1x16xf32> to vector<8x16xf32>
    %cst_9 = arith.constant dense<0.000000e+00> : vector<8x128xf32>
    %7 = tpu.matmul %6, %0, %cst_9 {dimension_numbers = #tpu.dot_dimension_numbers<[1], [0], [0], [1], [0, 0, 1, 1], [], []>} : vector<8x16xf32>, vector<16x128xf32>, vector<8x128xf32> -> vector<8x128xf32>
    %cst_10 = arith.constant dense<0.000000e+00> : vector<8x128xf32>
    %8 = tpu.matmul %3, %1, %cst_10 {dimension_numbers = #tpu.dot_dimension_numbers<[1], [0], [0], [1], [0, 0, 1, 1], [], []>} : vector<8x32xf32>, vector<32x128xf32>, vector<8x128xf32> -> vector<8x128xf32>
    %9 = arith.addf %7, %8 : vector<8x128xf32>
    %10 = vector.broadcast %2 : vector<1x128xf32> to vector<8x128xf32>
    %11 = arith.addf %9, %10 : vector<8x128xf32>
    %12 = vector.extract_strided_slice %11 {offsets = [0, 0], sizes = [8, 32], strides = [1, 1]} : vector<8x128xf32> to vector<8x32xf32>
    %13 = arith.negf %12 : vector<8x32xf32>
    %14 = math.exp %13 : vector<8x32xf32>
    %cst_11 = arith.constant 1.000000e+00 : f32
    %15 = vector.broadcast %cst_11 : f32 to vector<8x32xf32>
    %16 = arith.addf %15, %14 : vector<8x32xf32>
    %17 = arith.divf %15, %16 : vector<8x32xf32>
    %18 = vector.extract_strided_slice %11 {offsets = [0, 32], sizes = [8, 32], strides = [1, 1]} : vector<8x128xf32> to vector<8x32xf32>
    %19 = arith.negf %18 : vector<8x32xf32>
    %20 = math.exp %19 : vector<8x32xf32>
    %cst_12 = arith.constant 1.000000e+00 : f32
    %21 = vector.broadcast %cst_12 : f32 to vector<8x32xf32>
    %22 = arith.addf %21, %20 : vector<8x32xf32>
    %23 = arith.divf %21, %22 : vector<8x32xf32>
    %24 = vector.extract_strided_slice %11 {offsets = [0, 64], sizes = [8, 32], strides = [1, 1]} : vector<8x128xf32> to vector<8x32xf32>
    %25 = math.tanh %24 : vector<8x32xf32>
    %26 = vector.extract_strided_slice %11 {offsets = [0, 96], sizes = [8, 32], strides = [1, 1]} : vector<8x128xf32> to vector<8x32xf32>
    %27 = arith.negf %26 : vector<8x32xf32>
    %28 = math.exp %27 : vector<8x32xf32>
    %cst_13 = arith.constant 1.000000e+00 : f32
    %29 = vector.broadcast %cst_13 : f32 to vector<8x32xf32>
    %30 = arith.addf %29, %28 : vector<8x32xf32>
    %31 = arith.divf %29, %30 : vector<8x32xf32>
    %32 = arith.mulf %23, %4 : vector<8x32xf32>
    %33 = arith.mulf %17, %25 : vector<8x32xf32>
    %34 = arith.addf %32, %33 : vector<8x32xf32>
    %35 = math.tanh %34 : vector<8x32xf32>
    %36 = arith.mulf %31, %35 : vector<8x32xf32>
    %c0_14 = arith.constant 0 : index
    %c1 = arith.constant 1 : index
    %c0_15 = arith.constant 0 : index
    %37 = vector.load %arg0[%c0_14, %c1, %c0_15] : memref<8x8x16xf32, #tpu.memory_space<vmem>>, vector<8x1x16xf32>
    %38 = vector.shape_cast %37 : vector<8x1x16xf32> to vector<8x16xf32>
    %cst_16 = arith.constant dense<0.000000e+00> : vector<8x128xf32>
    %39 = tpu.matmul %38, %0, %cst_16 {dimension_numbers = #tpu.dot_dimension_numbers<[1], [0], [0], [1], [0, 0, 1, 1], [], []>} : vector<8x16xf32>, vector<16x128xf32>, vector<8x128xf32> -> vector<8x128xf32>
    %cst_17 = arith.constant dense<0.000000e+00> : vector<8x128xf32>
    %40 = tpu.matmul %36, %1, %cst_17 {dimension_numbers = #tpu.dot_dimension_numbers<[1], [0], [0], [1], [0, 0, 1, 1], [], []>} : vector<8x32xf32>, vector<32x128xf32>, vector<8x128xf32> -> vector<8x128xf32>
    %41 = arith.addf %39, %40 : vector<8x128xf32>
    %42 = vector.broadcast %2 : vector<1x128xf32> to vector<8x128xf32>
    %43 = arith.addf %41, %42 : vector<8x128xf32>
    %44 = vector.extract_strided_slice %43 {offsets = [0, 0], sizes = [8, 32], strides = [1, 1]} : vector<8x128xf32> to vector<8x32xf32>
    %45 = arith.negf %44 : vector<8x32xf32>
    %46 = math.exp %45 : vector<8x32xf32>
    %cst_18 = arith.constant 1.000000e+00 : f32
    %47 = vector.broadcast %cst_18 : f32 to vector<8x32xf32>
    %48 = arith.addf %47, %46 : vector<8x32xf32>
    %49 = arith.divf %47, %48 : vector<8x32xf32>
    %50 = vector.extract_strided_slice %43 {offsets = [0, 32], sizes = [8, 32], strides = [1, 1]} : vector<8x128xf32> to vector<8x32xf32>
    %51 = arith.negf %50 : vector<8x32xf32>
    %52 = math.exp %51 : vector<8x32xf32>
    %cst_19 = arith.constant 1.000000e+00 : f32
    %53 = vector.broadcast %cst_19 : f32 to vector<8x32xf32>
    %54 = arith.addf %53, %52 : vector<8x32xf32>
    %55 = arith.divf %53, %54 : vector<8x32xf32>
    %56 = vector.extract_strided_slice %43 {offsets = [0, 64], sizes = [8, 32], strides = [1, 1]} : vector<8x128xf32> to vector<8x32xf32>
    %57 = math.tanh %56 : vector<8x32xf32>
    %58 = vector.extract_strided_slice %43 {offsets = [0, 96], sizes = [8, 32], strides = [1, 1]} : vector<8x128xf32> to vector<8x32xf32>
    %59 = arith.negf %58 : vector<8x32xf32>
    %60 = math.exp %59 : vector<8x32xf32>
    %cst_20 = arith.constant 1.000000e+00 : f32
    %61 = vector.broadcast %cst_20 : f32 to vector<8x32xf32>
    %62 = arith.addf %61, %60 : vector<8x32xf32>
    %63 = arith.divf %61, %62 : vector<8x32xf32>
    %64 = arith.mulf %55, %34 : vector<8x32xf32>
    %65 = arith.mulf %49, %57 : vector<8x32xf32>
    %66 = arith.addf %64, %65 : vector<8x32xf32>
    %67 = math.tanh %66 : vector<8x32xf32>
    %68 = arith.mulf %63, %67 : vector<8x32xf32>
    %c0_21 = arith.constant 0 : index
    %c2 = arith.constant 2 : index
    %c0_22 = arith.constant 0 : index
    %69 = vector.load %arg0[%c0_21, %c2, %c0_22] : memref<8x8x16xf32, #tpu.memory_space<vmem>>, vector<8x1x16xf32>
    %70 = vector.shape_cast %69 : vector<8x1x16xf32> to vector<8x16xf32>
    %cst_23 = arith.constant dense<0.000000e+00> : vector<8x128xf32>
    %71 = tpu.matmul %70, %0, %cst_23 {dimension_numbers = #tpu.dot_dimension_numbers<[1], [0], [0], [1], [0, 0, 1, 1], [], []>} : vector<8x16xf32>, vector<16x128xf32>, vector<8x128xf32> -> vector<8x128xf32>
    %cst_24 = arith.constant dense<0.000000e+00> : vector<8x128xf32>
    %72 = tpu.matmul %68, %1, %cst_24 {dimension_numbers = #tpu.dot_dimension_numbers<[1], [0], [0], [1], [0, 0, 1, 1], [], []>} : vector<8x32xf32>, vector<32x128xf32>, vector<8x128xf32> -> vector<8x128xf32>
    %73 = arith.addf %71, %72 : vector<8x128xf32>
    %74 = vector.broadcast %2 : vector<1x128xf32> to vector<8x128xf32>
    %75 = arith.addf %73, %74 : vector<8x128xf32>
    %76 = vector.extract_strided_slice %75 {offsets = [0, 0], sizes = [8, 32], strides = [1, 1]} : vector<8x128xf32> to vector<8x32xf32>
    %77 = arith.negf %76 : vector<8x32xf32>
    %78 = math.exp %77 : vector<8x32xf32>
    %cst_25 = arith.constant 1.000000e+00 : f32
    %79 = vector.broadcast %cst_25 : f32 to vector<8x32xf32>
    %80 = arith.addf %79, %78 : vector<8x32xf32>
    %81 = arith.divf %79, %80 : vector<8x32xf32>
    %82 = vector.extract_strided_slice %75 {offsets = [0, 32], sizes = [8, 32], strides = [1, 1]} : vector<8x128xf32> to vector<8x32xf32>
    %83 = arith.negf %82 : vector<8x32xf32>
    %84 = math.exp %83 : vector<8x32xf32>
    %cst_26 = arith.constant 1.000000e+00 : f32
    %85 = vector.broadcast %cst_26 : f32 to vector<8x32xf32>
    %86 = arith.addf %85, %84 : vector<8x32xf32>
    %87 = arith.divf %85, %86 : vector<8x32xf32>
    %88 = vector.extract_strided_slice %75 {offsets = [0, 64], sizes = [8, 32], strides = [1, 1]} : vector<8x128xf32> to vector<8x32xf32>
    %89 = math.tanh %88 : vector<8x32xf32>
    %90 = vector.extract_strided_slice %75 {offsets = [0, 96], sizes = [8, 32], strides = [1, 1]} : vector<8x128xf32> to vector<8x32xf32>
    %91 = arith.negf %90 : vector<8x32xf32>
    %92 = math.exp %91 : vector<8x32xf32>
    %cst_27 = arith.constant 1.000000e+00 : f32
    %93 = vector.broadcast %cst_27 : f32 to vector<8x32xf32>
    %94 = arith.addf %93, %92 : vector<8x32xf32>
    %95 = arith.divf %93, %94 : vector<8x32xf32>
    %96 = arith.mulf %87, %66 : vector<8x32xf32>
    %97 = arith.mulf %81, %89 : vector<8x32xf32>
    %98 = arith.addf %96, %97 : vector<8x32xf32>
    %99 = math.tanh %98 : vector<8x32xf32>
    %100 = arith.mulf %95, %99 : vector<8x32xf32>
    %c0_28 = arith.constant 0 : index
    %c3 = arith.constant 3 : index
    %c0_29 = arith.constant 0 : index
    %101 = vector.load %arg0[%c0_28, %c3, %c0_29] : memref<8x8x16xf32, #tpu.memory_space<vmem>>, vector<8x1x16xf32>
    %102 = vector.shape_cast %101 : vector<8x1x16xf32> to vector<8x16xf32>
    %cst_30 = arith.constant dense<0.000000e+00> : vector<8x128xf32>
    %103 = tpu.matmul %102, %0, %cst_30 {dimension_numbers = #tpu.dot_dimension_numbers<[1], [0], [0], [1], [0, 0, 1, 1], [], []>} : vector<8x16xf32>, vector<16x128xf32>, vector<8x128xf32> -> vector<8x128xf32>
    %cst_31 = arith.constant dense<0.000000e+00> : vector<8x128xf32>
    %104 = tpu.matmul %100, %1, %cst_31 {dimension_numbers = #tpu.dot_dimension_numbers<[1], [0], [0], [1], [0, 0, 1, 1], [], []>} : vector<8x32xf32>, vector<32x128xf32>, vector<8x128xf32> -> vector<8x128xf32>
    %105 = arith.addf %103, %104 : vector<8x128xf32>
    %106 = vector.broadcast %2 : vector<1x128xf32> to vector<8x128xf32>
    %107 = arith.addf %105, %106 : vector<8x128xf32>
    %108 = vector.extract_strided_slice %107 {offsets = [0, 0], sizes = [8, 32], strides = [1, 1]} : vector<8x128xf32> to vector<8x32xf32>
    %109 = arith.negf %108 : vector<8x32xf32>
    %110 = math.exp %109 : vector<8x32xf32>
    %cst_32 = arith.constant 1.000000e+00 : f32
    %111 = vector.broadcast %cst_32 : f32 to vector<8x32xf32>
    %112 = arith.addf %111, %110 : vector<8x32xf32>
    %113 = arith.divf %111, %112 : vector<8x32xf32>
    %114 = vector.extract_strided_slice %107 {offsets = [0, 32], sizes = [8, 32], strides = [1, 1]} : vector<8x128xf32> to vector<8x32xf32>
    %115 = arith.negf %114 : vector<8x32xf32>
    %116 = math.exp %115 : vector<8x32xf32>
    %cst_33 = arith.constant 1.000000e+00 : f32
    %117 = vector.broadcast %cst_33 : f32 to vector<8x32xf32>
    %118 = arith.addf %117, %116 : vector<8x32xf32>
    %119 = arith.divf %117, %118 : vector<8x32xf32>
    %120 = vector.extract_strided_slice %107 {offsets = [0, 64], sizes = [8, 32], strides = [1, 1]} : vector<8x128xf32> to vector<8x32xf32>
    %121 = math.tanh %120 : vector<8x32xf32>
    %122 = vector.extract_strided_slice %107 {offsets = [0, 96], sizes = [8, 32], strides = [1, 1]} : vector<8x128xf32> to vector<8x32xf32>
    %123 = arith.negf %122 : vector<8x32xf32>
    %124 = math.exp %123 : vector<8x32xf32>
    %cst_34 = arith.constant 1.000000e+00 : f32
    %125 = vector.broadcast %cst_34 : f32 to vector<8x32xf32>
    %126 = arith.addf %125, %124 : vector<8x32xf32>
    %127 = arith.divf %125, %126 : vector<8x32xf32>
    %128 = arith.mulf %119, %98 : vector<8x32xf32>
    %129 = arith.mulf %113, %121 : vector<8x32xf32>
    %130 = arith.addf %128, %129 : vector<8x32xf32>
    %131 = math.tanh %130 : vector<8x32xf32>
    %132 = arith.mulf %127, %131 : vector<8x32xf32>
    %c0_35 = arith.constant 0 : index
    %c4 = arith.constant 4 : index
    %c0_36 = arith.constant 0 : index
    %133 = vector.load %arg0[%c0_35, %c4, %c0_36] : memref<8x8x16xf32, #tpu.memory_space<vmem>>, vector<8x1x16xf32>
    %134 = vector.shape_cast %133 : vector<8x1x16xf32> to vector<8x16xf32>
    %cst_37 = arith.constant dense<0.000000e+00> : vector<8x128xf32>
    %135 = tpu.matmul %134, %0, %cst_37 {dimension_numbers = #tpu.dot_dimension_numbers<[1], [0], [0], [1], [0, 0, 1, 1], [], []>} : vector<8x16xf32>, vector<16x128xf32>, vector<8x128xf32> -> vector<8x128xf32>
    %cst_38 = arith.constant dense<0.000000e+00> : vector<8x128xf32>
    %136 = tpu.matmul %132, %1, %cst_38 {dimension_numbers = #tpu.dot_dimension_numbers<[1], [0], [0], [1], [0, 0, 1, 1], [], []>} : vector<8x32xf32>, vector<32x128xf32>, vector<8x128xf32> -> vector<8x128xf32>
    %137 = arith.addf %135, %136 : vector<8x128xf32>
    %138 = vector.broadcast %2 : vector<1x128xf32> to vector<8x128xf32>
    %139 = arith.addf %137, %138 : vector<8x128xf32>
    %140 = vector.extract_strided_slice %139 {offsets = [0, 0], sizes = [8, 32], strides = [1, 1]} : vector<8x128xf32> to vector<8x32xf32>
    %141 = arith.negf %140 : vector<8x32xf32>
    %142 = math.exp %141 : vector<8x32xf32>
    %cst_39 = arith.constant 1.000000e+00 : f32
    %143 = vector.broadcast %cst_39 : f32 to vector<8x32xf32>
    %144 = arith.addf %143, %142 : vector<8x32xf32>
    %145 = arith.divf %143, %144 : vector<8x32xf32>
    %146 = vector.extract_strided_slice %139 {offsets = [0, 32], sizes = [8, 32], strides = [1, 1]} : vector<8x128xf32> to vector<8x32xf32>
    %147 = arith.negf %146 : vector<8x32xf32>
    %148 = math.exp %147 : vector<8x32xf32>
    %cst_40 = arith.constant 1.000000e+00 : f32
    %149 = vector.broadcast %cst_40 : f32 to vector<8x32xf32>
    %150 = arith.addf %149, %148 : vector<8x32xf32>
    %151 = arith.divf %149, %150 : vector<8x32xf32>
    %152 = vector.extract_strided_slice %139 {offsets = [0, 64], sizes = [8, 32], strides = [1, 1]} : vector<8x128xf32> to vector<8x32xf32>
    %153 = math.tanh %152 : vector<8x32xf32>
    %154 = vector.extract_strided_slice %139 {offsets = [0, 96], sizes = [8, 32], strides = [1, 1]} : vector<8x128xf32> to vector<8x32xf32>
    %155 = arith.negf %154 : vector<8x32xf32>
    %156 = math.exp %155 : vector<8x32xf32>
    %cst_41 = arith.constant 1.000000e+00 : f32
    %157 = vector.broadcast %cst_41 : f32 to vector<8x32xf32>
    %158 = arith.addf %157, %156 : vector<8x32xf32>
    %159 = arith.divf %157, %158 : vector<8x32xf32>
    %160 = arith.mulf %151, %130 : vector<8x32xf32>
    %161 = arith.mulf %145, %153 : vector<8x32xf32>
    %162 = arith.addf %160, %161 : vector<8x32xf32>
    %163 = math.tanh %162 : vector<8x32xf32>
    %164 = arith.mulf %159, %163 : vector<8x32xf32>
    %c0_42 = arith.constant 0 : index
    %c5 = arith.constant 5 : index
    %c0_43 = arith.constant 0 : index
    %165 = vector.load %arg0[%c0_42, %c5, %c0_43] : memref<8x8x16xf32, #tpu.memory_space<vmem>>, vector<8x1x16xf32>
    %166 = vector.shape_cast %165 : vector<8x1x16xf32> to vector<8x16xf32>
    %cst_44 = arith.constant dense<0.000000e+00> : vector<8x128xf32>
    %167 = tpu.matmul %166, %0, %cst_44 {dimension_numbers = #tpu.dot_dimension_numbers<[1], [0], [0], [1], [0, 0, 1, 1], [], []>} : vector<8x16xf32>, vector<16x128xf32>, vector<8x128xf32> -> vector<8x128xf32>
    %cst_45 = arith.constant dense<0.000000e+00> : vector<8x128xf32>
    %168 = tpu.matmul %164, %1, %cst_45 {dimension_numbers = #tpu.dot_dimension_numbers<[1], [0], [0], [1], [0, 0, 1, 1], [], []>} : vector<8x32xf32>, vector<32x128xf32>, vector<8x128xf32> -> vector<8x128xf32>
    %169 = arith.addf %167, %168 : vector<8x128xf32>
    %170 = vector.broadcast %2 : vector<1x128xf32> to vector<8x128xf32>
    %171 = arith.addf %169, %170 : vector<8x128xf32>
    %172 = vector.extract_strided_slice %171 {offsets = [0, 0], sizes = [8, 32], strides = [1, 1]} : vector<8x128xf32> to vector<8x32xf32>
    %173 = arith.negf %172 : vector<8x32xf32>
    %174 = math.exp %173 : vector<8x32xf32>
    %cst_46 = arith.constant 1.000000e+00 : f32
    %175 = vector.broadcast %cst_46 : f32 to vector<8x32xf32>
    %176 = arith.addf %175, %174 : vector<8x32xf32>
    %177 = arith.divf %175, %176 : vector<8x32xf32>
    %178 = vector.extract_strided_slice %171 {offsets = [0, 32], sizes = [8, 32], strides = [1, 1]} : vector<8x128xf32> to vector<8x32xf32>
    %179 = arith.negf %178 : vector<8x32xf32>
    %180 = math.exp %179 : vector<8x32xf32>
    %cst_47 = arith.constant 1.000000e+00 : f32
    %181 = vector.broadcast %cst_47 : f32 to vector<8x32xf32>
    %182 = arith.addf %181, %180 : vector<8x32xf32>
    %183 = arith.divf %181, %182 : vector<8x32xf32>
    %184 = vector.extract_strided_slice %171 {offsets = [0, 64], sizes = [8, 32], strides = [1, 1]} : vector<8x128xf32> to vector<8x32xf32>
    %185 = math.tanh %184 : vector<8x32xf32>
    %186 = vector.extract_strided_slice %171 {offsets = [0, 96], sizes = [8, 32], strides = [1, 1]} : vector<8x128xf32> to vector<8x32xf32>
    %187 = arith.negf %186 : vector<8x32xf32>
    %188 = math.exp %187 : vector<8x32xf32>
    %cst_48 = arith.constant 1.000000e+00 : f32
    %189 = vector.broadcast %cst_48 : f32 to vector<8x32xf32>
    %190 = arith.addf %189, %188 : vector<8x32xf32>
    %191 = arith.divf %189, %190 : vector<8x32xf32>
    %192 = arith.mulf %183, %162 : vector<8x32xf32>
    %193 = arith.mulf %177, %185 : vector<8x32xf32>
    %194 = arith.addf %192, %193 : vector<8x32xf32>
    %195 = math.tanh %194 : vector<8x32xf32>
    %196 = arith.mulf %191, %195 : vector<8x32xf32>
    %c0_49 = arith.constant 0 : index
    %c6 = arith.constant 6 : index
    %c0_50 = arith.constant 0 : index
    %197 = vector.load %arg0[%c0_49, %c6, %c0_50] : memref<8x8x16xf32, #tpu.memory_space<vmem>>, vector<8x1x16xf32>
    %198 = vector.shape_cast %197 : vector<8x1x16xf32> to vector<8x16xf32>
    %cst_51 = arith.constant dense<0.000000e+00> : vector<8x128xf32>
    %199 = tpu.matmul %198, %0, %cst_51 {dimension_numbers = #tpu.dot_dimension_numbers<[1], [0], [0], [1], [0, 0, 1, 1], [], []>} : vector<8x16xf32>, vector<16x128xf32>, vector<8x128xf32> -> vector<8x128xf32>
    %cst_52 = arith.constant dense<0.000000e+00> : vector<8x128xf32>
    %200 = tpu.matmul %196, %1, %cst_52 {dimension_numbers = #tpu.dot_dimension_numbers<[1], [0], [0], [1], [0, 0, 1, 1], [], []>} : vector<8x32xf32>, vector<32x128xf32>, vector<8x128xf32> -> vector<8x128xf32>
    %201 = arith.addf %199, %200 : vector<8x128xf32>
    %202 = vector.broadcast %2 : vector<1x128xf32> to vector<8x128xf32>
    %203 = arith.addf %201, %202 : vector<8x128xf32>
    %204 = vector.extract_strided_slice %203 {offsets = [0, 0], sizes = [8, 32], strides = [1, 1]} : vector<8x128xf32> to vector<8x32xf32>
    %205 = arith.negf %204 : vector<8x32xf32>
    %206 = math.exp %205 : vector<8x32xf32>
    %cst_53 = arith.constant 1.000000e+00 : f32
    %207 = vector.broadcast %cst_53 : f32 to vector<8x32xf32>
    %208 = arith.addf %207, %206 : vector<8x32xf32>
    %209 = arith.divf %207, %208 : vector<8x32xf32>
    %210 = vector.extract_strided_slice %203 {offsets = [0, 32], sizes = [8, 32], strides = [1, 1]} : vector<8x128xf32> to vector<8x32xf32>
    %211 = arith.negf %210 : vector<8x32xf32>
    %212 = math.exp %211 : vector<8x32xf32>
    %cst_54 = arith.constant 1.000000e+00 : f32
    %213 = vector.broadcast %cst_54 : f32 to vector<8x32xf32>
    %214 = arith.addf %213, %212 : vector<8x32xf32>
    %215 = arith.divf %213, %214 : vector<8x32xf32>
    %216 = vector.extract_strided_slice %203 {offsets = [0, 64], sizes = [8, 32], strides = [1, 1]} : vector<8x128xf32> to vector<8x32xf32>
    %217 = math.tanh %216 : vector<8x32xf32>
    %218 = vector.extract_strided_slice %203 {offsets = [0, 96], sizes = [8, 32], strides = [1, 1]} : vector<8x128xf32> to vector<8x32xf32>
    %219 = arith.negf %218 : vector<8x32xf32>
    %220 = math.exp %219 : vector<8x32xf32>
    %cst_55 = arith.constant 1.000000e+00 : f32
    %221 = vector.broadcast %cst_55 : f32 to vector<8x32xf32>
    %222 = arith.addf %221, %220 : vector<8x32xf32>
    %223 = arith.divf %221, %222 : vector<8x32xf32>
    %224 = arith.mulf %215, %194 : vector<8x32xf32>
    %225 = arith.mulf %209, %217 : vector<8x32xf32>
    %226 = arith.addf %224, %225 : vector<8x32xf32>
    %227 = math.tanh %226 : vector<8x32xf32>
    %228 = arith.mulf %223, %227 : vector<8x32xf32>
    %c0_56 = arith.constant 0 : index
    %c7 = arith.constant 7 : index
    %c0_57 = arith.constant 0 : index
    %229 = vector.load %arg0[%c0_56, %c7, %c0_57] : memref<8x8x16xf32, #tpu.memory_space<vmem>>, vector<8x1x16xf32>
    %230 = vector.shape_cast %229 : vector<8x1x16xf32> to vector<8x16xf32>
    %cst_58 = arith.constant dense<0.000000e+00> : vector<8x128xf32>
    %231 = tpu.matmul %230, %0, %cst_58 {dimension_numbers = #tpu.dot_dimension_numbers<[1], [0], [0], [1], [0, 0, 1, 1], [], []>} : vector<8x16xf32>, vector<16x128xf32>, vector<8x128xf32> -> vector<8x128xf32>
    %cst_59 = arith.constant dense<0.000000e+00> : vector<8x128xf32>
    %232 = tpu.matmul %228, %1, %cst_59 {dimension_numbers = #tpu.dot_dimension_numbers<[1], [0], [0], [1], [0, 0, 1, 1], [], []>} : vector<8x32xf32>, vector<32x128xf32>, vector<8x128xf32> -> vector<8x128xf32>
    %233 = arith.addf %231, %232 : vector<8x128xf32>
    %234 = vector.broadcast %2 : vector<1x128xf32> to vector<8x128xf32>
    %235 = arith.addf %233, %234 : vector<8x128xf32>
    %236 = vector.extract_strided_slice %235 {offsets = [0, 0], sizes = [8, 32], strides = [1, 1]} : vector<8x128xf32> to vector<8x32xf32>
    %237 = arith.negf %236 : vector<8x32xf32>
    %238 = math.exp %237 : vector<8x32xf32>
    %cst_60 = arith.constant 1.000000e+00 : f32
    %239 = vector.broadcast %cst_60 : f32 to vector<8x32xf32>
    %240 = arith.addf %239, %238 : vector<8x32xf32>
    %241 = arith.divf %239, %240 : vector<8x32xf32>
    %242 = vector.extract_strided_slice %235 {offsets = [0, 32], sizes = [8, 32], strides = [1, 1]} : vector<8x128xf32> to vector<8x32xf32>
    %243 = arith.negf %242 : vector<8x32xf32>
    %244 = math.exp %243 : vector<8x32xf32>
    %cst_61 = arith.constant 1.000000e+00 : f32
    %245 = vector.broadcast %cst_61 : f32 to vector<8x32xf32>
    %246 = arith.addf %245, %244 : vector<8x32xf32>
    %247 = arith.divf %245, %246 : vector<8x32xf32>
    %248 = vector.extract_strided_slice %235 {offsets = [0, 64], sizes = [8, 32], strides = [1, 1]} : vector<8x128xf32> to vector<8x32xf32>
    %249 = math.tanh %248 : vector<8x32xf32>
    %250 = vector.extract_strided_slice %235 {offsets = [0, 96], sizes = [8, 32], strides = [1, 1]} : vector<8x128xf32> to vector<8x32xf32>
    %251 = arith.negf %250 : vector<8x32xf32>
    %252 = math.exp %251 : vector<8x32xf32>
    %cst_62 = arith.constant 1.000000e+00 : f32
    %253 = vector.broadcast %cst_62 : f32 to vector<8x32xf32>
    %254 = arith.addf %253, %252 : vector<8x32xf32>
    %255 = arith.divf %253, %254 : vector<8x32xf32>
    %256 = arith.mulf %247, %226 : vector<8x32xf32>
    %257 = arith.mulf %241, %249 : vector<8x32xf32>
    %258 = arith.addf %256, %257 : vector<8x32xf32>
    %259 = math.tanh %258 : vector<8x32xf32>
    %260 = arith.mulf %255, %259 : vector<8x32xf32>
    %c0_63 = arith.constant 0 : index
    %c0_64 = arith.constant 0 : index
    %261 = vector.load %arg4[%c0_63, %c0_64] : memref<32x128xf32, #tpu.memory_space<vmem>>, vector<32x128xf32>
    %cst_65 = arith.constant dense<0.000000e+00> : vector<8x128xf32>
    %262 = tpu.matmul %260, %261, %cst_65 {dimension_numbers = #tpu.dot_dimension_numbers<[1], [0], [0], [1], [0, 0, 1, 1], [], []>} : vector<8x32xf32>, vector<32x128xf32>, vector<8x128xf32> -> vector<8x128xf32>
    %c0_66 = arith.constant 0 : index
    %c0_67 = arith.constant 0 : index
    %263 = vector.load %arg5[%c0_66, %c0_67] : memref<1x128xf32, #tpu.memory_space<vmem>>, vector<1x128xf32>
    %264 = vector.broadcast %263 : vector<1x128xf32> to vector<8x128xf32>
    %265 = arith.addf %262, %264 : vector<8x128xf32>
    %c0_68 = arith.constant 0 : index
    %c0_69 = arith.constant 0 : index
    %266 = vector.load %arg6[%c0_68, %c0_69] : memref<8x128xf32, #tpu.memory_space<vmem>>, vector<8x128xf32>
    tpu.vector_store %arg6[%c0_68, %c0_69], %265 {strides = array<i32>} : memref<8x128xf32, #tpu.memory_space<vmem>>, vector<8x128xf32>,
    return
  }
}

</mosaic_0001>

<llo_original>
// kernel: tpu_custom_call.1
$region0: #{tpu_custom_call.1}
  #allocation0 [shape = 'u32[]', space=smem, size = 0x4, offset = 0x4, fixed_abs, tag = 'smem constant byte address 0x4 - core index']
  #allocation1 [shape = 'u32[144,128]{1,0:T(1,128)}', space=vmem, size = 0x12000, scoped, tag = 'internal scratch']
  %s0 = inlined_call_operand.hbm [shape: f32[8,8,16], index: 0, kind: input, shape index: {}]
  %s1 = inlined_call_operand.hbm [shape: f32[16,128], index: 1, kind: input, shape index: {}]
  %s2 = inlined_call_operand.hbm [shape: f32[32,128], index: 2, kind: input, shape index: {}]
  %s3 = inlined_call_operand.vmem [shape: f32[1,128], index: 3, kind: input, shape index: {}]
  %s4 = inlined_call_operand.hbm [shape: f32[32,128], index: 4, kind: input, shape index: {}]
  %s5 = inlined_call_operand.vmem [shape: f32[1,128], index: 5, kind: input, shape index: {}]
  %s6 = inlined_call_operand.hbm [shape: f32[8,128], index: 6, kind: output, shape index: {}]
  %s7 = sld [smem:[#allocation0]]
  $region50: #{tpu_custom_call.1} parent=0
    _
  %s9 = ssub.s32 1, %s7
  %s10 = scalar_select 0, %s9, %s7
  $region1: #{tpu_custom_call.1} parent=0
    #allocation2 [shape = 'u8[32768]{0}', space=vmem, size = 0x8000, scoped, tag = 'input window, operand 0, single buffered']
    #allocation3 [shape = 's32[1]{0}', space=sflag, size = 0x4, scoped, tag = 'scoped memory for tpu_custom_call.1']
    #allocation4 [shape = 's32[1]{0}', space=sflag, size = 0x4, scoped, tag = 'scoped memory for tpu_custom_call.1']
    #allocation5 [shape = 'u8[8192]{0}', space=vmem, size = 0x2000, scoped, tag = 'input window, operand 1, single buffered']
    #allocation6 [shape = 's32[1]{0}', space=sflag, size = 0x4, scoped, tag = 'scoped memory for tpu_custom_call.1']
    #allocation7 [shape = 'u8[16384]{0}', space=vmem, size = 0x4000, scoped, tag = 'input window, operand 2, single buffered']
    #allocation8 [shape = 'u8[16384]{0}', space=vmem, size = 0x4000, scoped, tag = 'input window, operand 4, single buffered']
    #allocation9 [shape = 's32[1]{0}', space=sflag, size = 0x4, scoped, tag = 'scoped memory for tpu_custom_call.1']
    #allocation10 [shape = 'u8[4096]{0}', space=vmem, size = 0x1000, scoped, tag = 'output window, operand 0, single buffered']
    %11 = vsyncpa [#allocation3], 0
    %12 = vsyncpa [#allocation6], 0
    %13 = vsyncpa [#allocation9], 0
    %14 = vsyncpa [#allocation4], 0
    // Predicated region
    $region2: #{tpu_custom_call.1} parent=1 // pred_check
      _
    $region3: #{tpu_custom_call.1} parent=1 // pred_check_branch
      %16 = sbr.rel (0) target = $region5
    $region4: #{tpu_custom_call.1} parent=1 // pred_region
      %s18 = ssub.s32 1024, 1024
      %19 = vsyncadd [#allocation3], %s18
      %s20 = sshll.u32 [#allocation2], 4
      %s21 = int_to_ptr.vmem [resolvable:$true] %s20
      %26 = dma.hbm_to_vmem [thread:$0]  %s0, 1024, %s21, [#allocation3], 128, 128, 8
    $region5: #{tpu_custom_call.1} parent=1 // pred_fallthru
      _
    // Predicated region
    $region6: #{tpu_custom_call.1} parent=1 // pred_check
      _
    $region7: #{tpu_custom_call.1} parent=1 // pred_check_branch
      %28 = sbr.rel (0) target = $region9
    $region8: #{tpu_custom_call.1} parent=1 // pred_region
      %s30 = ssub.s32 256, 256
      %31 = vsyncadd [#allocation6], %s30
      %s32 = sshll.u32 [#allocation5], 4
      %s33 = int_to_ptr.vmem [resolvable:$true] %s32
      %38 = dma.hbm_to_vmem [thread:$0]  %s1, 256, %s33, [#allocation6], 128, 128, 8
    $region9: #{tpu_custom_call.1} parent=1 // pred_fallthru
      _
    // Predicated region
    $region10: #{tpu_custom_call.1} parent=1 // pred_check
      _
    $region11: #{tpu_custom_call.1} parent=1 // pred_check_branch
      %40 = sbr.rel (0) target = $region13
    $region12: #{tpu_custom_call.1} parent=1 // pred_region
      %s42 = ssub.s32 512, 512
      %43 = vsyncadd [#allocation6], %s42
      %s44 = sshll.u32 [#allocation7], 4
      %s45 = int_to_ptr.vmem [resolvable:$true] %s44
      %50 = dma.hbm_to_vmem [thread:$0]  %s2, 512, %s45, [#allocation6], 128, 128, 8
    $region13: #{tpu_custom_call.1} parent=1 // pred_fallthru
      _
    // Predicated region
    $region14: #{tpu_custom_call.1} parent=1 // pred_check
      _
    $region15: #{tpu_custom_call.1} parent=1 // pred_check_branch
      %52 = sbr.rel (0) target = $region17
    $region16: #{tpu_custom_call.1} parent=1 // pred_region
      _
    $region17: #{tpu_custom_call.1} parent=1 // pred_fallthru
      _
    // Predicated region
    $region18: #{tpu_custom_call.1} parent=1 // pred_check
      _
    $region19: #{tpu_custom_call.1} parent=1 // pred_check_branch
      %54 = sbr.rel (0) target = $region21
    $region20: #{tpu_custom_call.1} parent=1 // pred_region
      %s56 = ssub.s32 512, 512
      %57 = vsyncadd [#allocation9], %s56
      %s58 = sshll.u32 [#allocation8], 4
      %s59 = int_to_ptr.vmem [resolvable:$true] %s58
      %64 = dma.hbm_to_vmem [thread:$0]  %s4, 512, %s59, [#allocation9], 128, 128, 8
    $region21: #{tpu_custom_call.1} parent=1 // pred_fallthru
      _
    // Predicated region
    $region22: #{tpu_custom_call.1} parent=1 // pred_check
      _
    $region23: #{tpu_custom_call.1} parent=1 // pred_check_branch
      %66 = sbr.rel (0) target = $region25
    $region24: #{tpu_custom_call.1} parent=1 // pred_region
      _
    $region25: #{tpu_custom_call.1} parent=1 // pred_fallthru
      _
    // Predicated region
    $region26: #{tpu_custom_call.1} parent=1 // pred_check
      _
    $region27: #{tpu_custom_call.1} parent=1 // pred_check_branch
      %68 = sbr.rel (0) target = $region29
    $region28: #{tpu_custom_call.1} parent=1 // pred_region
      %69 = dma.done [#allocation3], 1024
    $region29: #{tpu_custom_call.1} parent=1 // pred_fallthru
      _
    // Predicated region
    $region30: #{tpu_custom_call.1} parent=1 // pred_check
      _
    $region31: #{tpu_custom_call.1} parent=1 // pred_check_branch
      %71 = sbr.rel (0) target = $region33
    $region32: #{tpu_custom_call.1} parent=1 // pred_region
      %72 = dma.done [#allocation6], 256
    $region33: #{tpu_custom_call.1} parent=1 // pred_fallthru
      _
    // Predicated region
    $region34: #{tpu_custom_call.1} parent=1 // pred_check
      _
    $region35: #{tpu_custom_call.1} parent=1 // pred_check_branch
      %74 = sbr.rel (0) target = $region37
    $region36: #{tpu_custom_call.1} parent=1 // pred_region
      %75 = dma.done [#allocation6], 512
    $region37: #{tpu_custom_call.1} parent=1 // pred_fallthru
      _
    // Predicated region
    $region38: #{tpu_custom_call.1} parent=1 // pred_check
      _
    $region39: #{tpu_custom_call.1} parent=1 // pred_check_branch
      %77 = sbr.rel (0) target = $region41
    $region40: #{tpu_custom_call.1} parent=1 // pred_region
      %78 = dma.done [#allocation9], 512
    $region41: #{tpu_custom_call.1} parent=1 // pred_fallthru
      _
    %v79 = vld [vmem:[#allocation5] sm:$0xff]
    %v80 = vld [vmem:[#allocation5 + $0x8] sm:$0xff]
    %v81 = vld [vmem:[#allocation7] sm:$0xff]
    %v82 = vld [vmem:[#allocation7 + $0x8] sm:$0xff]
    %v83 = vld [vmem:[#allocation7 + $0x10] sm:$0xff]
    %v84 = vld [vmem:[#allocation7 + $0x18] sm:$0xff]
    %v85 = vld [vmem:[%s3] sm:$0x1]
    %v86 = vld [vmem:[#allocation2] sm:$0x1]
    %v87 = vld [vmem:[#allocation2 + $0x8] sm:$0x1]
    %v88 = vld [vmem:[#allocation2 + $0x10] sm:$0x1]
    %v89 = vld [vmem:[#allocation2 + $0x18] sm:$0x1]
    %v90 = vld [vmem:[#allocation2 + $0x20] sm:$0x1]
    %v91 = vld [vmem:[#allocation2 + $0x28] sm:$0x1]
    %v92 = vld [vmem:[#allocation2 + $0x30] sm:$0x1]
    %v93 = vld [vmem:[#allocation2 + $0x38] sm:$0x1]
    %vm94 = vcmask 261120
    %v96 = vsel %vm94, 0.0, 0
    %98 = vmatprep.subr.mxu0 0.0
    %99 = vmatpush1.msra.mxu0 %v81
    %100 = vmatprep.subr.mxu0 0.0
    %101 = vmatpush1.msra.mxu0 %v82
    %102 = vmatprep.subr.mxu0 0.0
    %103 = vmatpush1.msra.mxu0 %v83
    %104 = vmatprep.subr.mxu0 0.0
    %105 = vmatpush1.msra.mxu0 %v84
    %106 = vmatprep.subr.mxu0 0.0
    %107 = vmatpush1.msra.mxu0 0.0
    %108 = vmatprep.subr.mxu0 0.0
    %109 = vmatpush1.msra.mxu0 0.0
    %110 = vmatprep.subr.mxu0 0.0
    %111 = vmatpush1.msra.mxu0 0.0
    %112 = vmatprep.subr.mxu0 0.0
    %113 = vmatpush1.msra.mxu0 0.0
    %114 = vmatprep.subr.mxu0 0.0
    %115 = vmatpush1.msra.mxu0 0.0
    %116 = vmatprep.subr.mxu0 0.0
    %117 = vmatpush1.msra.mxu0 0.0
    %118 = vmatprep.subr.mxu0 0.0
    %119 = vmatpush1.msra.mxu0 0.0
    %120 = vmatprep.subr.mxu0 0.0
    %121 = vmatpush1.msra.mxu0 0.0
    %122 = vmatprep.subr.mxu0 0.0
    %123 = vmatpush1.msra.mxu0 0.0
    %124 = vmatprep.subr.mxu0 0.0
    %125 = vmatpush1.msra.mxu0 0.0
    %126 = vmatprep.subr.mxu0 0.0
    %127 = vmatpush1.msra.mxu0 0.0
    %128 = vmatprep.subr.mxu0 0.0
    %129 = vmatpush1.msra.mxu0 0.0
    %130 = vmatprep.subr.mxu0 0.0
    %131 = vmatpush1.msra.mxu0 0.0
    %132 = vmatprep.subr.mxu0 0.0
    %133 = vmatpush1.msra.mxu0 0.0
    %134 = vmatprep.subr.mxu0 0.0
    %135 = vmatpush1.msra.mxu0 0.0
    %136 = vmatprep.subr.mxu0 0.0
    %137 = vmatpush1.msra.mxu0 0.0
    %138 = vmatprep.subr.mxu0 0.0
    %139 = vmatpush1.msra.mxu0 0.0
    %140 = vmatprep.subr.mxu0 0.0
    %141 = vmatpush1.msra.mxu0 0.0
    %142 = vmatprep.subr.mxu0 0.0
    %143 = vmatpush1.msra.mxu0 0.0
    %144 = vmatprep.subr.mxu0 0.0
    %145 = vmatpush1.msra.mxu0 0.0
    %146 = vmatprep.subr.mxu0 0.0
    %147 = vmatpush1.msra.mxu0 0.0
    %148 = vmatprep.subr.mxu0 0.0
    %149 = vmatpush1.msra.mxu0 0.0
    %150 = vmatprep.subr.mxu0 0.0
    %151 = vmatpush1.msra.mxu0 0.0
    %152 = vmatprep.subr.mxu0 0.0
    %153 = vmatpush1.msra.mxu0 0.0
    %154 = vmatprep.subr.mxu0 0.0
    %155 = vmatpush1.msra.mxu0 0.0
    %156 = vmatprep.subr.mxu0 0.0
    %157 = vmatpush1.msra.mxu0 0.0
    %158 = vmatprep.subr.mxu0 0.0
    %159 = vmatpush1.msra.mxu0 0.0
    %160 = vmatprep.subr.mxu0 0.0
    %161 = vmatpush1.msra.mxu0 0.0
    %162 = vmatprep.mubr.f32.mxu0 0.0
    %163 = vmatmul.mubr.f32.gmra.mrb[0].mxu0 %v96
    %v164 = vpop.f32.mrb[0].mxu0
    %v165 = vadd.f32 0.0, %v164
    %v166 = vpop.f32.mrb[0].mxu0
    %167 = vdwg.mxu0
    %v176 = vrot.slane %v87, 7
    %vm177 = vcmask 1041409
    %v178 = vsel %vm177, %v176, %v86
    %v179 = vrot.slane %v88, 6
    %vm180 = vcmask 1042434
    %v181 = vsel %vm180, %v179, %v178
    %v182 = vrot.slane %v89, 5
    %vm183 = vcmask 1043459
    %v184 = vsel %vm183, %v182, %v181
    %v185 = vrot.slane %v90, 4
    %vm186 = vcmask 1044484
    %v187 = vsel %vm186, %v185, %v184
    %v188 = vrot.slane %v91, 3
    %vm189 = vcmask 1045509
    %v190 = vsel %vm189, %v188, %v187
    %v191 = vrot.slane %v92, 2
    %vm192 = vcmask 1046534
    %v193 = vsel %vm192, %v191, %v190
    %v194 = vrot.slane %v93, 1
    %vm195 = vcmask 1047559
    %v196 = vsel %vm195, %v194, %v193
    %vm197 = vcmask 130048
    %v198 = vsel %vm197, %v196, 0
    %200 = vmatprep.subr.mxu0 0.0
    %201 = vmatpush1.msra.mxu0 %v79
    %202 = vmatprep.subr.mxu0 0.0
    %203 = vmatpush1.msra.mxu0 %v80
    %204 = vmatprep.subr.mxu0 0.0
    %205 = vmatpush1.msra.mxu0 0.0
    %206 = vmatprep.subr.mxu0 0.0
    %207 = vmatpush1.msra.mxu0 0.0
    %208 = vmatprep.subr.mxu0 0.0
    %209 = vmatpush1.msra.mxu0 0.0
    %210 = vmatprep.subr.mxu0 0.0
    %211 = vmatpush1.msra.mxu0 0.0
    %212 = vmatprep.subr.mxu0 0.0
    %213 = vmatpush1.msra.mxu0 0.0
    %214 = vmatprep.subr.mxu0 0.0
    %215 = vmatpush1.msra.mxu0 0.0
    %216 = vmatprep.subr.mxu0 0.0
    %217 = vmatpush1.msra.mxu0 0.0
    %218 = vmatprep.subr.mxu0 0.0
    %219 = vmatpush1.msra.mxu0 0.0
    %220 = vmatprep.subr.mxu0 0.0
    %221 = vmatpush1.msra.mxu0 0.0
    %222 = vmatprep.subr.mxu0 0.0
    %223 = vmatpush1.msra.mxu0 0.0
    %224 = vmatprep.subr.mxu0 0.0
    %225 = vmatpush1.msra.mxu0 0.0
    %226 = vmatprep.subr.mxu0 0.0
    %227 = vmatpush1.msra.mxu0 0.0
    %228 = vmatprep.subr.mxu0 0.0
    %229 = vmatpush1.msra.mxu0 0.0
    %230 = vmatprep.subr.mxu0 0.0
    %231 = vmatpush1.msra.mxu0 0.0
    %232 = vmatprep.subr.mxu0 0.0
    %233 = vmatpush1.msra.mxu0 0.0
    %234 = vmatprep.subr.mxu0 0.0
    %235 = vmatpush1.msra.mxu0 0.0
    %236 = vmatprep.subr.mxu0 0.0
    %237 = vmatpush1.msra.mxu0 0.0
    %238 = vmatprep.subr.mxu0 0.0
    %239 = vmatpush1.msra.mxu0 0.0
    %240 = vmatprep.subr.mxu0 0.0
    %241 = vmatpush1.msra.mxu0 0.0
    %242 = vmatprep.subr.mxu0 0.0
    %243 = vmatpush1.msra.mxu0 0.0
    %244 = vmatprep.subr.mxu0 0.0
    %245 = vmatpush1.msra.mxu0 0.0
    %246 = vmatprep.subr.mxu0 0.0
    %247 = vmatpush1.msra.mxu0 0.0
    %248 = vmatprep.subr.mxu0 0.0
    %249 = vmatpush1.msra.mxu0 0.0
    %250 = vmatprep.subr.mxu0 0.0
    %251 = vmatpush1.msra.mxu0 0.0
    %252 = vmatprep.subr.mxu0 0.0
    %253 = vmatpush1.msra.mxu0 0.0
    %254 = vmatprep.subr.mxu0 0.0
    %255 = vmatpush1.msra.mxu0 0.0
    %256 = vmatprep.subr.mxu0 0.0
    %257 = vmatpush1.msra.mxu0 0.0
    %258 = vmatprep.subr.mxu0 0.0
    %259 = vmatpush1.msra.mxu0 0.0
    %260 = vmatprep.subr.mxu0 0.0
    %261 = vmatpush1.msra.mxu0 0.0
    %262 = vmatprep.subr.mxu0 0.0
    %263 = vmatpush1.msra.mxu0 0.0
    %264 = vmatprep.mubr.f32.mxu0 0.0
    %265 = vmatmul.mubr.f32.gmra.mrb[0].mxu0 %v198
    %v266 = vpop.f32.mrb[0].mxu0
    %v267 = vadd.f32 %v165, %v266
    %v268 = vpop.f32.mrb[0].mxu0
    %269 = vdwg.mxu0
    %v271 = vlaneseq
    %v272 = vshrl.u32 %v271, 7
    %v273 = vsub.s32 0, %v272
    %v274 = vrot.slane %v85, %v273
    %v276 = vadd.f32 %v267, %v274
    %v277 = vxor.u32 %v276, 2147483648
    %v278 = vmul.f32 %v277, 1.442695
    %v279 = vpow.pop %v278
    %v280 = vadd.f32 %v279, 1.0
    %v281 = vrcp.pop %v280
    %v282 = vmul.f32 1.0, %v281
    %v283 = vtanh.pop %v276
    %v284 = vmul.f32 %v282, 0.0
    %286 = vrot.lane.b32.xlu0 %v283, 64
    %v287 = vpop.permute.xlu0 %286
    %v289 = vmul.f32 %v282, %v287
    %291 = vrot.lane.b32.xlu0 %v289, 32
    %v292 = vpop.permute.xlu0 %291
    %v294 = vadd.f32 %v284, %v292
    %v295 = vtanh.pop %v294
    %297 = vrot.lane.b32.xlu0 %v295, 64
    %v298 = vpop.permute.xlu0 %297
    %v300 = vmul.f32 %v282, %v298
    %v301 = vld [vmem:[#allocation2 + $0x1] sm:$0x1]
    %v302 = vld [vmem:[#allocation2 + $0x9] sm:$0x1]
    %v303 = vld [vmem:[#allocation2 + $0x11] sm:$0x1]
    %v304 = vld [vmem:[#allocation2 + $0x19] sm:$0x1]
    %v305 = vld [vmem:[#allocation2 + $0x21] sm:$0x1]
    %v306 = vld [vmem:[#allocation2 + $0x29] sm:$0x1]
    %v307 = vld [vmem:[#allocation2 + $0x31] sm:$0x1]
    %v308 = vld [vmem:[#allocation2 + $0x39] sm:$0x1]
    %310 = vrot.lane.b32.xlu0 %v300, 32
    %v311 = vpop.permute.xlu0 %310
    %v312 = vsel %vm94, %v311, 0
    %314 = vmatprep.subr.mxu0 0.0
    %315 = vmatpush1.msra.mxu0 %v81
    %316 = vmatprep.subr.mxu0 0.0
    %317 = vmatpush1.msra.mxu0 %v82
    %318 = vmatprep.subr.mxu0 0.0
    %319 = vmatpush1.msra.mxu0 %v83
    %320 = vmatprep.subr.mxu0 0.0
    %321 = vmatpush1.msra.mxu0 %v84
    %322 = vmatprep.subr.mxu0 0.0
    %323 = vmatpush1.msra.mxu0 0.0
    %324 = vmatprep.subr.mxu0 0.0
    %325 = vmatpush1.msra.mxu0 0.0
    %326 = vmatprep.subr.mxu0 0.0
    %327 = vmatpush1.msra.mxu0 0.0
    %328 = vmatprep.subr.mxu0 0.0
    %329 = vmatpush1.msra.mxu0 0.0
    %330 = vmatprep.subr.mxu0 0.0
    %331 = vmatpush1.msra.mxu0 0.0
    %332 = vmatprep.subr.mxu0 0.0
    %333 = vmatpush1.msra.mxu0 0.0
    %334 = vmatprep.subr.mxu0 0.0
    %335 = vmatpush1.msra.mxu0 0.0
    %336 = vmatprep.subr.mxu0 0.0
    %337 = vmatpush1.msra.mxu0 0.0
    %338 = vmatprep.subr.mxu0 0.0
    %339 = vmatpush1.msra.mxu0 0.0
    %340 = vmatprep.subr.mxu0 0.0
    %341 = vmatpush1.msra.mxu0 0.0
    %342 = vmatprep.subr.mxu0 0.0
    %343 = vmatpush1.msra.mxu0 0.0
    %344 = vmatprep.subr.mxu0 0.0
    %345 = vmatpush1.msra.mxu0 0.0
    %346 = vmatprep.subr.mxu0 0.0
    %347 = vmatpush1.msra.mxu0 0.0
    %348 = vmatprep.subr.mxu0 0.0
    %349 = vmatpush1.msra.mxu0 0.0
    %350 = vmatprep.subr.mxu0 0.0
    %351 = vmatpush1.msra.mxu0 0.0
    %352 = vmatprep.subr.mxu0 0.0
    %353 = vmatpush1.msra.mxu0 0.0
    %354 = vmatprep.subr.mxu0 0.0
    %355 = vmatpush1.msra.mxu0 0.0
    %356 = vmatprep.subr.mxu0 0.0
    %357 = vmatpush1.msra.mxu0 0.0
    %358 = vmatprep.subr.mxu0 0.0
    %359 = vmatpush1.msra.mxu0 0.0
    %360 = vmatprep.subr.mxu0 0.0
    %361 = vmatpush1.msra.mxu0 0.0
    %362 = vmatprep.subr.mxu0 0.0
    %363 = vmatpush1.msra.mxu0 0.0
    %364 = vmatprep.subr.mxu0 0.0
    %365 = vmatpush1.msra.mxu0 0.0
    %366 = vmatprep.subr.mxu0 0.0
    %367 = vmatpush1.msra.mxu0 0.0
    %368 = vmatprep.subr.mxu0 0.0
    %369 = vmatpush1.msra.mxu0 0.0
    %370 = vmatprep.subr.mxu0 0.0
    %371 = vmatpush1.msra.mxu0 0.0
    %372 = vmatprep.subr.mxu0 0.0
    %373 = vmatpush1.msra.mxu0 0.0
    %374 = vmatprep.subr.mxu0 0.0
    %375 = vmatpush1.msra.mxu0 0.0
    %376 = vmatprep.subr.mxu0 0.0
    %377 = vmatpush1.msra.mxu0 0.0
    %378 = vmatprep.mubr.f32.mxu0 0.0
    %379 = vmatmul.mubr.f32.gmra.mrb[0].mxu0 %v312
    %v380 = vpop.f32.mrb[0].mxu0
    %v381 = vadd.f32 0.0, %v380
    %v382 = vpop.f32.mrb[0].mxu0
    %383 = vdwg.mxu0
    %v392 = vrot.slane %v302, 7
    %v393 = vsel %vm177, %v392, %v301
    %v394 = vrot.slane %v303, 6
    %v395 = vsel %vm180, %v394, %v393
    %v396 = vrot.slane %v304, 5
    %v397 = vsel %vm183, %v396, %v395
    %v398 = vrot.slane %v305, 4
    %v399 = vsel %vm186, %v398, %v397
    %v400 = vrot.slane %v306, 3
    %v401 = vsel %vm189, %v400, %v399
    %v402 = vrot.slane %v307, 2
    %v403 = vsel %vm192, %v402, %v401
    %v404 = vrot.slane %v308, 1
    %v405 = vsel %vm195, %v404, %v403
    %v406 = vsel %vm197, %v405, 0
    %408 = vmatprep.subr.mxu0 0.0
    %409 = vmatpush1.msra.mxu0 %v79
    %410 = vmatprep.subr.mxu0 0.0
    %411 = vmatpush1.msra.mxu0 %v80
    %412 = vmatprep.subr.mxu0 0.0
    %413 = vmatpush1.msra.mxu0 0.0
    %414 = vmatprep.subr.mxu0 0.0
    %415 = vmatpush1.msra.mxu0 0.0
    %416 = vmatprep.subr.mxu0 0.0
    %417 = vmatpush1.msra.mxu0 0.0
    %418 = vmatprep.subr.mxu0 0.0
    %419 = vmatpush1.msra.mxu0 0.0
    %420 = vmatprep.subr.mxu0 0.0
    %421 = vmatpush1.msra.mxu0 0.0
    %422 = vmatprep.subr.mxu0 0.0
    %423 = vmatpush1.msra.mxu0 0.0
    %424 = vmatprep.subr.mxu0 0.0
    %425 = vmatpush1.msra.mxu0 0.0
    %426 = vmatprep.subr.mxu0 0.0
    %427 = vmatpush1.msra.mxu0 0.0
    %428 = vmatprep.subr.mxu0 0.0
    %429 = vmatpush1.msra.mxu0 0.0
    %430 = vmatprep.subr.mxu0 0.0
    %431 = vmatpush1.msra.mxu0 0.0
    %432 = vmatprep.subr.mxu0 0.0
    %433 = vmatpush1.msra.mxu0 0.0
    %434 = vmatprep.subr.mxu0 0.0
    %435 = vmatpush1.msra.mxu0 0.0
    %436 = vmatprep.subr.mxu0 0.0
    %437 = vmatpush1.msra.mxu0 0.0
    %438 = vmatprep.subr.mxu0 0.0
    %439 = vmatpush1.msra.mxu0 0.0
    %440 = vmatprep.subr.mxu0 0.0
    %441 = vmatpush1.msra.mxu0 0.0
    %442 = vmatprep.subr.mxu0 0.0
    %443 = vmatpush1.msra.mxu0 0.0
    %444 = vmatprep.subr.mxu0 0.0
    %445 = vmatpush1.msra.mxu0 0.0
    %446 = vmatprep.subr.mxu0 0.0
    %447 = vmatpush1.msra.mxu0 0.0
    %448 = vmatprep.subr.mxu0 0.0
    %449 = vmatpush1.msra.mxu0 0.0
    %450 = vmatprep.subr.mxu0 0.0
    %451 = vmatpush1.msra.mxu0 0.0
    %452 = vmatprep.subr.mxu0 0.0
    %453 = vmatpush1.msra.mxu0 0.0
    %454 = vmatprep.subr.mxu0 0.0
    %455 = vmatpush1.msra.mxu0 0.0
    %456 = vmatprep.subr.mxu0 0.0
    %457 = vmatpush1.msra.mxu0 0.0
    %458 = vmatprep.subr.mxu0 0.0
    %459 = vmatpush1.msra.mxu0 0.0
    %460 = vmatprep.subr.mxu0 0.0
    %461 = vmatpush1.msra.mxu0 0.0
    %462 = vmatprep.subr.mxu0 0.0
    %463 = vmatpush1.msra.mxu0 0.0
    %464 = vmatprep.subr.mxu0 0.0
    %465 = vmatpush1.msra.mxu0 0.0
    %466 = vmatprep.subr.mxu0 0.0
    %467 = vmatpush1.msra.mxu0 0.0
    %468 = vmatprep.subr.mxu0 0.0
    %469 = vmatpush1.msra.mxu0 0.0
    %470 = vmatprep.subr.mxu0 0.0
    %471 = vmatpush1.msra.mxu0 0.0
    %472 = vmatprep.mubr.f32.mxu0 0.0
    %473 = vmatmul.mubr.f32.gmra.mrb[0].mxu0 %v406
    %v474 = vpop.f32.mrb[0].mxu0
    %v475 = vadd.f32 %v381, %v474
    %v476 = vpop.f32.mrb[0].mxu0
    %477 = vdwg.mxu0
    %v478 = vadd.f32 %v475, %v274
    %v479 = vxor.u32 %v478, 2147483648
    %v480 = vmul.f32 %v479, 1.442695
    %v481 = vpow.pop %v480
    %v482 = vadd.f32 %v481, 1.0
    %v483 = vrcp.pop %v482
    %v484 = vmul.f32 1.0, %v483
    %v485 = vtanh.pop %v478
    %v486 = vmul.f32 %v484, %v294
    %488 = vrot.lane.b32.xlu0 %v485, 64
    %v489 = vpop.permute.xlu0 %488
    %v491 = vmul.f32 %v484, %v489
    %493 = vrot.lane.b32.xlu0 %v491, 32
    %v494 = vpop.permute.xlu0 %493
    %v496 = vadd.f32 %v486, %v494
    %v497 = vtanh.pop %v496
    %499 = vrot.lane.b32.xlu0 %v497, 64
    %v500 = vpop.permute.xlu0 %499
    %v502 = vmul.f32 %v484, %v500
    %v503 = vld [vmem:[#allocation2 + $0x2] sm:$0x1]
    %v504 = vld [vmem:[#allocation2 + $0xa] sm:$0x1]
    %v505 = vld [vmem:[#allocation2 + $0x12] sm:$0x1]
    %v506 = vld [vmem:[#allocation2 + $0x1a] sm:$0x1]
    %v507 = vld [vmem:[#allocation2 + $0x22] sm:$0x1]
    %v508 = vld [vmem:[#allocation2 + $0x2a] sm:$0x1]
    %v509 = vld [vmem:[#allocation2 + $0x32] sm:$0x1]
    %v510 = vld [vmem:[#allocation2 + $0x3a] sm:$0x1]
    %512 = vrot.lane.b32.xlu0 %v502, 32
    %v513 = vpop.permute.xlu0 %512
    %v514 = vsel %vm94, %v513, 0
    %516 = vmatprep.subr.mxu0 0.0
    %517 = vmatpush1.msra.mxu0 %v81
    %518 = vmatprep.subr.mxu0 0.0
    %519 = vmatpush1.msra.mxu0 %v82
    %520 = vmatprep.subr.mxu0 0.0
    %521 = vmatpush1.msra.mxu0 %v83
    %522 = vmatprep.subr.mxu0 0.0
    %523 = vmatpush1.msra.mxu0 %v84
    %524 = vmatprep.subr.mxu0 0.0
    %525 = vmatpush1.msra.mxu0 0.0
    %526 = vmatprep.subr.mxu0 0.0
    %527 = vmatpush1.msra.mxu0 0.0
    %528 = vmatprep.subr.mxu0 0.0
    %529 = vmatpush1.msra.mxu0 0.0
    %530 = vmatprep.subr.mxu0 0.0
    %531 = vmatpush1.msra.mxu0 0.0
    %532 = vmatprep.subr.mxu0 0.0
    %533 = vmatpush1.msra.mxu0 0.0
    %534 = vmatprep.subr.mxu0 0.0
    %535 = vmatpush1.msra.mxu0 0.0
    %536 = vmatprep.subr.mxu0 0.0
    %537 = vmatpush1.msra.mxu0 0.0
    %538 = vmatprep.subr.mxu0 0.0
    %539 = vmatpush1.msra.mxu0 0.0
    %540 = vmatprep.subr.mxu0 0.0
    %541 = vmatpush1.msra.mxu0 0.0
    %542 = vmatprep.subr.mxu0 0.0
    %543 = vmatpush1.msra.mxu0 0.0
    %544 = vmatprep.subr.mxu0 0.0
    %545 = vmatpush1.msra.mxu0 0.0
    %546 = vmatprep.subr.mxu0 0.0
    %547 = vmatpush1.msra.mxu0 0.0
    %548 = vmatprep.subr.mxu0 0.0
    %549 = vmatpush1.msra.mxu0 0.0
    %550 = vmatprep.subr.mxu0 0.0
    %551 = vmatpush1.msra.mxu0 0.0
    %552 = vmatprep.subr.mxu0 0.0
    %553 = vmatpush1.msra.mxu0 0.0
    %554 = vmatprep.subr.mxu0 0.0
    %555 = vmatpush1.msra.mxu0 0.0
    %556 = vmatprep.subr.mxu0 0.0
    %557 = vmatpush1.msra.mxu0 0.0
    %558 = vmatprep.subr.mxu0 0.0
    %559 = vmatpush1.msra.mxu0 0.0
    %560 = vmatprep.subr.mxu0 0.0
    %561 = vmatpush1.msra.mxu0 0.0
    %562 = vmatprep.subr.mxu0 0.0
    %563 = vmatpush1.msra.mxu0 0.0
    %564 = vmatprep.subr.mxu0 0.0
    %565 = vmatpush1.msra.mxu0 0.0
    %566 = vmatprep.subr.mxu0 0.0
    %567 = vmatpush1.msra.mxu0 0.0
    %568 = vmatprep.subr.mxu0 0.0
    %569 = vmatpush1.msra.mxu0 0.0
    %570 = vmatprep.subr.mxu0 0.0
    %571 = vmatpush1.msra.mxu0 0.0
    %572 = vmatprep.subr.mxu0 0.0
    %573 = vmatpush1.msra.mxu0 0.0
    %574 = vmatprep.subr.mxu0 0.0
    %575 = vmatpush1.msra.mxu0 0.0
    %576 = vmatprep.subr.mxu0 0.0
    %577 = vmatpush1.msra.mxu0 0.0
    %578 = vmatprep.subr.mxu0 0.0
    %579 = vmatpush1.msra.mxu0 0.0
    %580 = vmatprep.mubr.f32.mxu0 0.0
    %581 = vmatmul.mubr.f32.gmra.mrb[0].mxu0 %v514
    %v582 = vpop.f32.mrb[0].mxu0
    %v583 = vadd.f32 0.0, %v582
    %v584 = vpop.f32.mrb[0].mxu0
    %585 = vdwg.mxu0
    %v594 = vrot.slane %v504, 7
    %v595 = vsel %vm177, %v594, %v503
    %v596 = vrot.slane %v505, 6
    %v597 = vsel %vm180, %v596, %v595
    %v598 = vrot.slane %v506, 5
    %v599 = vsel %vm183, %v598, %v597
    %v600 = vrot.slane %v507, 4
    %v601 = vsel %vm186, %v600, %v599
    %v602 = vrot.slane %v508, 3
    %v603 = vsel %vm189, %v602, %v601
    %v604 = vrot.slane %v509, 2
    %v605 = vsel %vm192, %v604, %v603
    %v606 = vrot.slane %v510, 1
    %v607 = vsel %vm195, %v606, %v605
    %v608 = vsel %vm197, %v607, 0
    %610 = vmatprep.subr.mxu0 0.0
    %611 = vmatpush1.msra.mxu0 %v79
    %612 = vmatprep.subr.mxu0 0.0
    %613 = vmatpush1.msra.mxu0 %v80
    %614 = vmatprep.subr.mxu0 0.0
    %615 = vmatpush1.msra.mxu0 0.0
    %616 = vmatprep.subr.mxu0 0.0
    %617 = vmatpush1.msra.mxu0 0.0
    %618 = vmatprep.subr.mxu0 0.0
    %619 = vmatpush1.msra.mxu0 0.0
    %620 = vmatprep.subr.mxu0 0.0
    %621 = vmatpush1.msra.mxu0 0.0
    %622 = vmatprep.subr.mxu0 0.0
    %623 = vmatpush1.msra.mxu0 0.0
    %624 = vmatprep.subr.mxu0 0.0
    %625 = vmatpush1.msra.mxu0 0.0
    %626 = vmatprep.subr.mxu0 0.0
    %627 = vmatpush1.msra.mxu0 0.0
    %628 = vmatprep.subr.mxu0 0.0
    %629 = vmatpush1.msra.mxu0 0.0
    %630 = vmatprep.subr.mxu0 0.0
    %631 = vmatpush1.msra.mxu0 0.0
    %632 = vmatprep.subr.mxu0 0.0
    %633 = vmatpush1.msra.mxu0 0.0
    %634 = vmatprep.subr.mxu0 0.0
    %635 = vmatpush1.msra.mxu0 0.0
    %636 = vmatprep.subr.mxu0 0.0
    %637 = vmatpush1.msra.mxu0 0.0
    %638 = vmatprep.subr.mxu0 0.0
    %639 = vmatpush1.msra.mxu0 0.0
    %640 = vmatprep.subr.mxu0 0.0
    %641 = vmatpush1.msra.mxu0 0.0
    %642 = vmatprep.subr.mxu0 0.0
    %643 = vmatpush1.msra.mxu0 0.0
    %644 = vmatprep.subr.mxu0 0.0
    %645 = vmatpush1.msra.mxu0 0.0
    %646 = vmatprep.subr.mxu0 0.0
    %647 = vmatpush1.msra.mxu0 0.0
    %648 = vmatprep.subr.mxu0 0.0
    %649 = vmatpush1.msra.mxu0 0.0
    %650 = vmatprep.subr.mxu0 0.0
    %651 = vmatpush1.msra.mxu0 0.0
    %652 = vmatprep.subr.mxu0 0.0
    %653 = vmatpush1.msra.mxu0 0.0
    %654 = vmatprep.subr.mxu0 0.0
    %655 = vmatpush1.msra.mxu0 0.0
    %656 = vmatprep.subr.mxu0 0.0
    %657 = vmatpush1.msra.mxu0 0.0
    %658 = vmatprep.subr.mxu0 0.0
    %659 = vmatpush1.msra.mxu0 0.0
    %660 = vmatprep.subr.mxu0 0.0
    %661 = vmatpush1.msra.mxu0 0.0
    %662 = vmatprep.subr.mxu0 0.0
    %663 = vmatpush1.msra.mxu0 0.0
    %664 = vmatprep.subr.mxu0 0.0
    %665 = vmatpush1.msra.mxu0 0.0
    %666 = vmatprep.subr.mxu0 0.0
    %667 = vmatpush1.msra.mxu0 0.0
    %668 = vmatprep.subr.mxu0 0.0
    %669 = vmatpush1.msra.mxu0 0.0
    %670 = vmatprep.subr.mxu0 0.0
    %671 = vmatpush1.msra.mxu0 0.0
    %672 = vmatprep.subr.mxu0 0.0
    %673 = vmatpush1.msra.mxu0 0.0
    %674 = vmatprep.mubr.f32.mxu0 0.0
    %675 = vmatmul.mubr.f32.gmra.mrb[0].mxu0 %v608
    %v676 = vpop.f32.mrb[0].mxu0
    %v677 = vadd.f32 %v583, %v676
    %v678 = vpop.f32.mrb[0].mxu0
    %679 = vdwg.mxu0
    %v680 = vadd.f32 %v677, %v274
    %v681 = vxor.u32 %v680, 2147483648
    %v682 = vmul.f32 %v681, 1.442695
    %v683 = vpow.pop %v682
    %v684 = vadd.f32 %v683, 1.0
    %v685 = vrcp.pop %v684
    %v686 = vmul.f32 1.0, %v685
    %v687 = vtanh.pop %v680
    %v688 = vmul.f32 %v686, %v496
    %690 = vrot.lane.b32.xlu0 %v687, 64
    %v691 = vpop.permute.xlu0 %690
    %v693 = vmul.f32 %v686, %v691
    %695 = vrot.lane.b32.xlu0 %v693, 32
    %v696 = vpop.permute.xlu0 %695
    %v698 = vadd.f32 %v688, %v696
    %v699 = vtanh.pop %v698
    %701 = vrot.lane.b32.xlu0 %v699, 64
    %v702 = vpop.permute.xlu0 %701
    %v704 = vmul.f32 %v686, %v702
    %v705 = vld [vmem:[#allocation2 + $0x3] sm:$0x1]
    %v706 = vld [vmem:[#allocation2 + $0xb] sm:$0x1]
    %v707 = vld [vmem:[#allocation2 + $0x13] sm:$0x1]
    %v708 = vld [vmem:[#allocation2 + $0x1b] sm:$0x1]
    %v709 = vld [vmem:[#allocation2 + $0x23] sm:$0x1]
    %v710 = vld [vmem:[#allocation2 + $0x2b] sm:$0x1]
    %v711 = vld [vmem:[#allocation2 + $0x33] sm:$0x1]
    %v712 = vld [vmem:[#allocation2 + $0x3b] sm:$0x1]
    %714 = vrot.lane.b32.xlu0 %v704, 32
    %v715 = vpop.permute.xlu0 %714
    %v716 = vsel %vm94, %v715, 0
    %718 = vmatprep.subr.mxu0 0.0
    %719 = vmatpush1.msra.mxu0 %v81
    %720 = vmatprep.subr.mxu0 0.0
    %721 = vmatpush1.msra.mxu0 %v82
    %722 = vmatprep.subr.mxu0 0.0
    %723 = vmatpush1.msra.mxu0 %v83
    %724 = vmatprep.subr.mxu0 0.0
    %725 = vmatpush1.msra.mxu0 %v84
    %726 = vmatprep.subr.mxu0 0.0
    %727 = vmatpush1.msra.mxu0 0.0
    %728 = vmatprep.subr.mxu0 0.0
    %729 = vmatpush1.msra.mxu0 0.0
    %730 = vmatprep.subr.mxu0 0.0
    %731 = vmatpush1.msra.mxu0 0.0
    %732 = vmatprep.subr.mxu0 0.0
    %733 = vmatpush1.msra.mxu0 0.0
    %734 = vmatprep.subr.mxu0 0.0
    %735 = vmatpush1.msra.mxu0 0.0
    %736 = vmatprep.subr.mxu0 0.0
    %737 = vmatpush1.msra.mxu0 0.0
    %738 = vmatprep.subr.mxu0 0.0
    %739 = vmatpush1.msra.mxu0 0.0
    %740 = vmatprep.subr.mxu0 0.0
    %741 = vmatpush1.msra.mxu0 0.0
    %742 = vmatprep.subr.mxu0 0.0
    %743 = vmatpush1.msra.mxu0 0.0
    %744 = vmatprep.subr.mxu0 0.0
    %745 = vmatpush1.msra.mxu0 0.0
    %746 = vmatprep.subr.mxu0 0.0
    %747 = vmatpush1.msra.mxu0 0.0
    %748 = vmatprep.subr.mxu0 0.0
    %749 = vmatpush1.msra.mxu0 0.0
    %750 = vmatprep.subr.mxu0 0.0
    %751 = vmatpush1.msra.mxu0 0.0
    %752 = vmatprep.subr.mxu0 0.0
    %753 = vmatpush1.msra.mxu0 0.0
    %754 = vmatprep.subr.mxu0 0.0
    %755 = vmatpush1.msra.mxu0 0.0
    %756 = vmatprep.subr.mxu0 0.0
    %757 = vmatpush1.msra.mxu0 0.0
    %758 = vmatprep.subr.mxu0 0.0
    %759 = vmatpush1.msra.mxu0 0.0
    %760 = vmatprep.subr.mxu0 0.0
    %761 = vmatpush1.msra.mxu0 0.0
    %762 = vmatprep.subr.mxu0 0.0
    %763 = vmatpush1.msra.mxu0 0.0
    %764 = vmatprep.subr.mxu0 0.0
    %765 = vmatpush1.msra.mxu0 0.0
    %766 = vmatprep.subr.mxu0 0.0
    %767 = vmatpush1.msra.mxu0 0.0
    %768 = vmatprep.subr.mxu0 0.0
    %769 = vmatpush1.msra.mxu0 0.0
    %770 = vmatprep.subr.mxu0 0.0
    %771 = vmatpush1.msra.mxu0 0.0
    %772 = vmatprep.subr.mxu0 0.0
    %773 = vmatpush1.msra.mxu0 0.0
    %774 = vmatprep.subr.mxu0 0.0
    %775 = vmatpush1.msra.mxu0 0.0
    %776 = vmatprep.subr.mxu0 0.0
    %777 = vmatpush1.msra.mxu0 0.0
    %778 = vmatprep.subr.mxu0 0.0
    %779 = vmatpush1.msra.mxu0 0.0
    %780 = vmatprep.subr.mxu0 0.0
    %781 = vmatpush1.msra.mxu0 0.0
    %782 = vmatprep.mubr.f32.mxu0 0.0
    %783 = vmatmul.mubr.f32.gmra.mrb[0].mxu0 %v716
    %v784 = vpop.f32.mrb[0].mxu0
    %v785 = vadd.f32 0.0, %v784
    %v786 = vpop.f32.mrb[0].mxu0
    %787 = vdwg.mxu0
    %v796 = vrot.slane %v706, 7
    %v797 = vsel %vm177, %v796, %v705
    %v798 = vrot.slane %v707, 6
    %v799 = vsel %vm180, %v798, %v797
    %v800 = vrot.slane %v708, 5
    %v801 = vsel %vm183, %v800, %v799
    %v802 = vrot.slane %v709, 4
    %v803 = vsel %vm186, %v802, %v801
    %v804 = vrot.slane %v710, 3
    %v805 = vsel %vm189, %v804, %v803
    %v806 = vrot.slane %v711, 2
    %v807 = vsel %vm192, %v806, %v805
    %v808 = vrot.slane %v712, 1
    %v809 = vsel %vm195, %v808, %v807
    %v810 = vsel %vm197, %v809, 0
    %812 = vmatprep.subr.mxu0 0.0
    %813 = vmatpush1.msra.mxu0 %v79
    %814 = vmatprep.subr.mxu0 0.0
    %815 = vmatpush1.msra.mxu0 %v80
    %816 = vmatprep.subr.mxu0 0.0
    %817 = vmatpush1.msra.mxu0 0.0
    %818 = vmatprep.subr.mxu0 0.0
    %819 = vmatpush1.msra.mxu0 0.0
    %820 = vmatprep.subr.mxu0 0.0
    %821 = vmatpush1.msra.mxu0 0.0
    %822 = vmatprep.subr.mxu0 0.0
    %823 = vmatpush1.msra.mxu0 0.0
    %824 = vmatprep.subr.mxu0 0.0
    %825 = vmatpush1.msra.mxu0 0.0
    %826 = vmatprep.subr.mxu0 0.0
    %827 = vmatpush1.msra.mxu0 0.0
    %828 = vmatprep.subr.mxu0 0.0
    %829 = vmatpush1.msra.mxu0 0.0
    %830 = vmatprep.subr.mxu0 0.0
    %831 = vmatpush1.msra.mxu0 0.0
    %832 = vmatprep.subr.mxu0 0.0
    %833 = vmatpush1.msra.mxu0 0.0
    %834 = vmatprep.subr.mxu0 0.0
    %835 = vmatpush1.msra.mxu0 0.0
    %836 = vmatprep.subr.mxu0 0.0
    %837 = vmatpush1.msra.mxu0 0.0
    %838 = vmatprep.subr.mxu0 0.0
    %839 = vmatpush1.msra.mxu0 0.0
    %840 = vmatprep.subr.mxu0 0.0
    %841 = vmatpush1.msra.mxu0 0.0
    %842 = vmatprep.subr.mxu0 0.0
    %843 = vmatpush1.msra.mxu0 0.0
    %844 = vmatprep.subr.mxu0 0.0
    %845 = vmatpush1.msra.mxu0 0.0
    %846 = vmatprep.subr.mxu0 0.0
    %847 = vmatpush1.msra.mxu0 0.0
    %848 = vmatprep.subr.mxu0 0.0
    %849 = vmatpush1.msra.mxu0 0.0
    %850 = vmatprep.subr.mxu0 0.0
    %851 = vmatpush1.msra.mxu0 0.0
    %852 = vmatprep.subr.mxu0 0.0
    %853 = vmatpush1.msra.mxu0 0.0
    %854 = vmatprep.subr.mxu0 0.0
    %855 = vmatpush1.msra.mxu0 0.0
    %856 = vmatprep.subr.mxu0 0.0
    %857 = vmatpush1.msra.mxu0 0.0
    %858 = vmatprep.subr.mxu0 0.0
    %859 = vmatpush1.msra.mxu0 0.0
    %860 = vmatprep.subr.mxu0 0.0
    %861 = vmatpush1.msra.mxu0 0.0
    %862 = vmatprep.subr.mxu0 0.0
    %863 = vmatpush1.msra.mxu0 0.0
    %864 = vmatprep.subr.mxu0 0.0
    %865 = vmatpush1.msra.mxu0 0.0
    %866 = vmatprep.subr.mxu0 0.0
    %867 = vmatpush1.msra.mxu0 0.0
    %868 = vmatprep.subr.mxu0 0.0
    %869 = vmatpush1.msra.mxu0 0.0
    %870 = vmatprep.subr.mxu0 0.0
    %871 = vmatpush1.msra.mxu0 0.0
    %872 = vmatprep.subr.mxu0 0.0
    %873 = vmatpush1.msra.mxu0 0.0
    %874 = vmatprep.subr.mxu0 0.0
    %875 = vmatpush1.msra.mxu0 0.0
    %876 = vmatprep.mubr.f32.mxu0 0.0
    %877 = vmatmul.mubr.f32.gmra.mrb[0].mxu0 %v810
    %v878 = vpop.f32.mrb[0].mxu0
    %v879 = vadd.f32 %v785, %v878
    %v880 = vpop.f32.mrb[0].mxu0
    %881 = vdwg.mxu0
    %v882 = vadd.f32 %v879, %v274
    %v883 = vxor.u32 %v882, 2147483648
    %v884 = vmul.f32 %v883, 1.442695
    %v885 = vpow.pop %v884
    %v886 = vadd.f32 %v885, 1.0
    %v887 = vrcp.pop %v886
    %v888 = vmul.f32 1.0, %v887
    %v889 = vtanh.pop %v882
    %v890 = vmul.f32 %v888, %v698
    %892 = vrot.lane.b32.xlu0 %v889, 64
    %v893 = vpop.permute.xlu0 %892
    %v895 = vmul.f32 %v888, %v893
    %897 = vrot.lane.b32.xlu0 %v895, 32
    %v898 = vpop.permute.xlu0 %897
    %v900 = vadd.f32 %v890, %v898
    %v901 = vtanh.pop %v900
    %903 = vrot.lane.b32.xlu0 %v901, 64
    %v904 = vpop.permute.xlu0 %903
    %v906 = vmul.f32 %v888, %v904
    %v907 = vld [vmem:[#allocation2 + $0x4] sm:$0x1]
    %v908 = vld [vmem:[#allocation2 + $0xc] sm:$0x1]
    %v909 = vld [vmem:[#allocation2 + $0x14] sm:$0x1]
    %v910 = vld [vmem:[#allocation2 + $0x1c] sm:$0x1]
    %v911 = vld [vmem:[#allocation2 + $0x24] sm:$0x1]
    %v912 = vld [vmem:[#allocation2 + $0x2c] sm:$0x1]
    %v913 = vld [vmem:[#allocation2 + $0x34] sm:$0x1]
    %v914 = vld [vmem:[#allocation2 + $0x3c] sm:$0x1]
    %916 = vrot.lane.b32.xlu0 %v906, 32
    %v917 = vpop.permute.xlu0 %916
    %v918 = vsel %vm94, %v917, 0
    %920 = vmatprep.subr.mxu0 0.0
    %921 = vmatpush1.msra.mxu0 %v81
    %922 = vmatprep.subr.mxu0 0.0
    %923 = vmatpush1.msra.mxu0 %v82
    %924 = vmatprep.subr.mxu0 0.0
    %925 = vmatpush1.msra.mxu0 %v83
    %926 = vmatprep.subr.mxu0 0.0
    %927 = vmatpush1.msra.mxu0 %v84
    %928 = vmatprep.subr.mxu0 0.0
    %929 = vmatpush1.msra.mxu0 0.0
    %930 = vmatprep.subr.mxu0 0.0
    %931 = vmatpush1.msra.mxu0 0.0
    %932 = vmatprep.subr.mxu0 0.0
    %933 = vmatpush1.msra.mxu0 0.0
    %934 = vmatprep.subr.mxu0 0.0
    %935 = vmatpush1.msra.mxu0 0.0
    %936 = vmatprep.subr.mxu0 0.0
    %937 = vmatpush1.msra.mxu0 0.0
    %938 = vmatprep.subr.mxu0 0.0
    %939 = vmatpush1.msra.mxu0 0.0
    %940 = vmatprep.subr.mxu0 0.0
    %941 = vmatpush1.msra.mxu0 0.0
    %942 = vmatprep.subr.mxu0 0.0
    %943 = vmatpush1.msra.mxu0 0.0
    %944 = vmatprep.subr.mxu0 0.0
    %945 = vmatpush1.msra.mxu0 0.0
    %946 = vmatprep.subr.mxu0 0.0
    %947 = vmatpush1.msra.mxu0 0.0
    %948 = vmatprep.subr.mxu0 0.0
    %949 = vmatpush1.msra.mxu0 0.0
    %950 = vmatprep.subr.mxu0 0.0
    %951 = vmatpush1.msra.mxu0 0.0
    %952 = vmatprep.subr.mxu0 0.0
    %953 = vmatpush1.msra.mxu0 0.0
    %954 = vmatprep.subr.mxu0 0.0
    %955 = vmatpush1.msra.mxu0 0.0
    %956 = vmatprep.subr.mxu0 0.0
    %957 = vmatpush1.msra.mxu0 0.0
    %958 = vmatprep.subr.mxu0 0.0
    %959 = vmatpush1.msra.mxu0 0.0
    %960 = vmatprep.subr.mxu0 0.0
    %961 = vmatpush1.msra.mxu0 0.0
    %962 = vmatprep.subr.mxu0 0.0
    %963 = vmatpush1.msra.mxu0 0.0
    %964 = vmatprep.subr.mxu0 0.0
    %965 = vmatpush1.msra.mxu0 0.0
    %966 = vmatprep.subr.mxu0 0.0
    %967 = vmatpush1.msra.mxu0 0.0
    %968 = vmatprep.subr.mxu0 0.0
    %969 = vmatpush1.msra.mxu0 0.0
    %970 = vmatprep.subr.mxu0 0.0
    %971 = vmatpush1.msra.mxu0 0.0
    %972 = vmatprep.subr.mxu0 0.0
    %973 = vmatpush1.msra.mxu0 0.0
    %974 = vmatprep.subr.mxu0 0.0
    %975 = vmatpush1.msra.mxu0 0.0
    %976 = vmatprep.subr.mxu0 0.0
    %977 = vmatpush1.msra.mxu0 0.0
    %978 = vmatprep.subr.mxu0 0.0
    %979 = vmatpush1.msra.mxu0 0.0
    %980 = vmatprep.subr.mxu0 0.0
    %981 = vmatpush1.msra.mxu0 0.0
    %982 = vmatprep.subr.mxu0 0.0
    %983 = vmatpush1.msra.mxu0 0.0
    %984 = vmatprep.mubr.f32.mxu0 0.0
    %985 = vmatmul.mubr.f32.gmra.mrb[0].mxu0 %v918
    %v986 = vpop.f32.mrb[0].mxu0
    %v987 = vadd.f32 0.0, %v986
    %v988 = vpop.f32.mrb[0].mxu0
    %989 = vdwg.mxu0
    %v998 = vrot.slane %v908, 7
    %v999 = vsel %vm177, %v998, %v907
    %v1000 = vrot.slane %v909, 6
    %v1001 = vsel %vm180, %v1000, %v999
    %v1002 = vrot.slane %v910, 5
    %v1003 = vsel %vm183, %v1002, %v1001
    %v1004 = vrot.slane %v911, 4
    %v1005 = vsel %vm186, %v1004, %v1003
    %v1006 = vrot.slane %v912, 3
    %v1007 = vsel %vm189, %v1006, %v1005
    %v1008 = vrot.slane %v913, 2
    %v1009 = vsel %vm192, %v1008, %v1007
    %v1010 = vrot.slane %v914, 1
    %v1011 = vsel %vm195, %v1010, %v1009
    %v1012 = vsel %vm197, %v1011, 0
    %1014 = vmatprep.subr.mxu0 0.0
    %1015 = vmatpush1.msra.mxu0 %v79
    %1016 = vmatprep.subr.mxu0 0.0
    %1017 = vmatpush1.msra.mxu0 %v80
    %1018 = vmatprep.subr.mxu0 0.0
    %1019 = vmatpush1.msra.mxu0 0.0
    %1020 = vmatprep.subr.mxu0 0.0
    %1021 = vmatpush1.msra.mxu0 0.0
    %1022 = vmatprep.subr.mxu0 0.0
    %1023 = vmatpush1.msra.mxu0 0.0
    %1024 = vmatprep.subr.mxu0 0.0
    %1025 = vmatpush1.msra.mxu0 0.0
    %1026 = vmatprep.subr.mxu0 0.0
    %1027 = vmatpush1.msra.mxu0 0.0
    %1028 = vmatprep.subr.mxu0 0.0
    %1029 = vmatpush1.msra.mxu0 0.0
    %1030 = vmatprep.subr.mxu0 0.0
    %1031 = vmatpush1.msra.mxu0 0.0
    %1032 = vmatprep.subr.mxu0 0.0
    %1033 = vmatpush1.msra.mxu0 0.0
    %1034 = vmatprep.subr.mxu0 0.0
    %1035 = vmatpush1.msra.mxu0 0.0
    %1036 = vmatprep.subr.mxu0 0.0
    %1037 = vmatpush1.msra.mxu0 0.0
    %1038 = vmatprep.subr.mxu0 0.0
    %1039 = vmatpush1.msra.mxu0 0.0
    %1040 = vmatprep.subr.mxu0 0.0
    %1041 = vmatpush1.msra.mxu0 0.0
    %1042 = vmatprep.subr.mxu0 0.0
    %1043 = vmatpush1.msra.mxu0 0.0
    %1044 = vmatprep.subr.mxu0 0.0
    %1045 = vmatpush1.msra.mxu0 0.0
    %1046 = vmatprep.subr.mxu0 0.0
    %1047 = vmatpush1.msra.mxu0 0.0
    %1048 = vmatprep.subr.mxu0 0.0
    %1049 = vmatpush1.msra.mxu0 0.0
    %1050 = vmatprep.subr.mxu0 0.0
    %1051 = vmatpush1.msra.mxu0 0.0
    %1052 = vmatprep.subr.mxu0 0.0
    %1053 = vmatpush1.msra.mxu0 0.0
    %1054 = vmatprep.subr.mxu0 0.0
    %1055 = vmatpush1.msra.mxu0 0.0
    %1056 = vmatprep.subr.mxu0 0.0
    %1057 = vmatpush1.msra.mxu0 0.0
    %1058 = vmatprep.subr.mxu0 0.0
    %1059 = vmatpush1.msra.mxu0 0.0
    %1060 = vmatprep.subr.mxu0 0.0
    %1061 = vmatpush1.msra.mxu0 0.0
    %1062 = vmatprep.subr.mxu0 0.0
    %1063 = vmatpush1.msra.mxu0 0.0
    %1064 = vmatprep.subr.mxu0 0.0
    %1065 = vmatpush1.msra.mxu0 0.0
    %1066 = vmatprep.subr.mxu0 0.0
    %1067 = vmatpush1.msra.mxu0 0.0
    %1068 = vmatprep.subr.mxu0 0.0
    %1069 = vmatpush1.msra.mxu0 0.0
    %1070 = vmatprep.subr.mxu0 0.0
    %1071 = vmatpush1.msra.mxu0 0.0
    %1072 = vmatprep.subr.mxu0 0.0
    %1073 = vmatpush1.msra.mxu0 0.0
    %1074 = vmatprep.subr.mxu0 0.0
    %1075 = vmatpush1.msra.mxu0 0.0
    %1076 = vmatprep.subr.mxu0 0.0
    %1077 = vmatpush1.msra.mxu0 0.0
    %1078 = vmatprep.mubr.f32.mxu0 0.0
    %1079 = vmatmul.mubr.f32.gmra.mrb[0].mxu0 %v1012
    %v1080 = vpop.f32.mrb[0].mxu0
    %v1081 = vadd.f32 %v987, %v1080
    %v1082 = vpop.f32.mrb[0].mxu0
    %1083 = vdwg.mxu0
    %v1084 = vadd.f32 %v1081, %v274
    %v1085 = vxor.u32 %v1084, 2147483648
    %v1086 = vmul.f32 %v1085, 1.442695
    %v1087 = vpow.pop %v1086
    %v1088 = vadd.f32 %v1087, 1.0
    %v1089 = vrcp.pop %v1088
    %v1090 = vmul.f32 1.0, %v1089
    %v1091 = vtanh.pop %v1084
    %v1092 = vmul.f32 %v1090, %v900
    %1094 = vrot.lane.b32.xlu0 %v1091, 64
    %v1095 = vpop.permute.xlu0 %1094
    %v1097 = vmul.f32 %v1090, %v1095
    %1099 = vrot.lane.b32.xlu0 %v1097, 32
    %v1100 = vpop.permute.xlu0 %1099
    %v1102 = vadd.f32 %v1092, %v1100
    %v1103 = vtanh.pop %v1102
    %1105 = vrot.lane.b32.xlu0 %v1103, 64
    %v1106 = vpop.permute.xlu0 %1105
    %v1108 = vmul.f32 %v1090, %v1106
    %v1109 = vld [vmem:[#allocation2 + $0x5] sm:$0x1]
    %v1110 = vld [vmem:[#allocation2 + $0xd] sm:$0x1]
    %v1111 = vld [vmem:[#allocation2 + $0x15] sm:$0x1]
    %v1112 = vld [vmem:[#allocation2 + $0x1d] sm:$0x1]
    %v1113 = vld [vmem:[#allocation2 + $0x25] sm:$0x1]
    %v1114 = vld [vmem:[#allocation2 + $0x2d] sm:$0x1]
    %v1115 = vld [vmem:[#allocation2 + $0x35] sm:$0x1]
    %v1116 = vld [vmem:[#allocation2 + $0x3d] sm:$0x1]
    %1118 = vrot.lane.b32.xlu0 %v1108, 32
    %v1119 = vpop.permute.xlu0 %1118
    %v1120 = vsel %vm94, %v1119, 0
    %1122 = vmatprep.subr.mxu0 0.0
    %1123 = vmatpush1.msra.mxu0 %v81
    %1124 = vmatprep.subr.mxu0 0.0
    %1125 = vmatpush1.msra.mxu0 %v82
    %1126 = vmatprep.subr.mxu0 0.0
    %1127 = vmatpush1.msra.mxu0 %v83
    %1128 = vmatprep.subr.mxu0 0.0
    %1129 = vmatpush1.msra.mxu0 %v84
    %1130 = vmatprep.subr.mxu0 0.0
    %1131 = vmatpush1.msra.mxu0 0.0
    %1132 = vmatprep.subr.mxu0 0.0
    %1133 = vmatpush1.msra.mxu0 0.0
    %1134 = vmatprep.subr.mxu0 0.0
    %1135 = vmatpush1.msra.mxu0 0.0
    %1136 = vmatprep.subr.mxu0 0.0
    %1137 = vmatpush1.msra.mxu0 0.0
    %1138 = vmatprep.subr.mxu0 0.0
    %1139 = vmatpush1.msra.mxu0 0.0
    %1140 = vmatprep.subr.mxu0 0.0
    %1141 = vmatpush1.msra.mxu0 0.0
    %1142 = vmatprep.subr.mxu0 0.0
    %1143 = vmatpush1.msra.mxu0 0.0
    %1144 = vmatprep.subr.mxu0 0.0
    %1145 = vmatpush1.msra.mxu0 0.0
    %1146 = vmatprep.subr.mxu0 0.0
    %1147 = vmatpush1.msra.mxu0 0.0
    %1148 = vmatprep.subr.mxu0 0.0
    %1149 = vmatpush1.msra.mxu0 0.0
    %1150 = vmatprep.subr.mxu0 0.0
    %1151 = vmatpush1.msra.mxu0 0.0
    %1152 = vmatprep.subr.mxu0 0.0
    %1153 = vmatpush1.msra.mxu0 0.0
    %1154 = vmatprep.subr.mxu0 0.0
    %1155 = vmatpush1.msra.mxu0 0.0
    %1156 = vmatprep.subr.mxu0 0.0
    %1157 = vmatpush1.msra.mxu0 0.0
    %1158 = vmatprep.subr.mxu0 0.0
    %1159 = vmatpush1.msra.mxu0 0.0
    %1160 = vmatprep.subr.mxu0 0.0
    %1161 = vmatpush1.msra.mxu0 0.0
    %1162 = vmatprep.subr.mxu0 0.0
    %1163 = vmatpush1.msra.mxu0 0.0
    %1164 = vmatprep.subr.mxu0 0.0
    %1165 = vmatpush1.msra.mxu0 0.0
    %1166 = vmatprep.subr.mxu0 0.0
    %1167 = vmatpush1.msra.mxu0 0.0
    %1168 = vmatprep.subr.mxu0 0.0
    %1169 = vmatpush1.msra.mxu0 0.0
    %1170 = vmatprep.subr.mxu0 0.0
    %1171 = vmatpush1.msra.mxu0 0.0
    %1172 = vmatprep.subr.mxu0 0.0
    %1173 = vmatpush1.msra.mxu0 0.0
    %1174 = vmatprep.subr.mxu0 0.0
    %1175 = vmatpush1.msra.mxu0 0.0
    %1176 = vmatprep.subr.mxu0 0.0
    %1177 = vmatpush1.msra.mxu0 0.0
    %1178 = vmatprep.subr.mxu0 0.0
    %1179 = vmatpush1.msra.mxu0 0.0
    %1180 = vmatprep.subr.mxu0 0.0
    %1181 = vmatpush1.msra.mxu0 0.0
    %1182 = vmatprep.subr.mxu0 0.0
    %1183 = vmatpush1.msra.mxu0 0.0
    %1184 = vmatprep.subr.mxu0 0.0
    %1185 = vmatpush1.msra.mxu0 0.0
    %1186 = vmatprep.mubr.f32.mxu0 0.0
    %1187 = vmatmul.mubr.f32.gmra.mrb[0].mxu0 %v1120
    %v1188 = vpop.f32.mrb[0].mxu0
    %v1189 = vadd.f32 0.0, %v1188
    %v1190 = vpop.f32.mrb[0].mxu0
    %1191 = vdwg.mxu0
    %v1200 = vrot.slane %v1110, 7
    %v1201 = vsel %vm177, %v1200, %v1109
    %v1202 = vrot.slane %v1111, 6
    %v1203 = vsel %vm180, %v1202, %v1201
    %v1204 = vrot.slane %v1112, 5
    %v1205 = vsel %vm183, %v1204, %v1203
    %v1206 = vrot.slane %v1113, 4
    %v1207 = vsel %vm186, %v1206, %v1205
    %v1208 = vrot.slane %v1114, 3
    %v1209 = vsel %vm189, %v1208, %v1207
    %v1210 = vrot.slane %v1115, 2
    %v1211 = vsel %vm192, %v1210, %v1209
    %v1212 = vrot.slane %v1116, 1
    %v1213 = vsel %vm195, %v1212, %v1211
    %v1214 = vsel %vm197, %v1213, 0
    %1216 = vmatprep.subr.mxu0 0.0
    %1217 = vmatpush1.msra.mxu0 %v79
    %1218 = vmatprep.subr.mxu0 0.0
    %1219 = vmatpush1.msra.mxu0 %v80
    %1220 = vmatprep.subr.mxu0 0.0
    %1221 = vmatpush1.msra.mxu0 0.0
    %1222 = vmatprep.subr.mxu0 0.0
    %1223 = vmatpush1.msra.mxu0 0.0
    %1224 = vmatprep.subr.mxu0 0.0
    %1225 = vmatpush1.msra.mxu0 0.0
    %1226 = vmatprep.subr.mxu0 0.0
    %1227 = vmatpush1.msra.mxu0 0.0
    %1228 = vmatprep.subr.mxu0 0.0
    %1229 = vmatpush1.msra.mxu0 0.0
    %1230 = vmatprep.subr.mxu0 0.0
    %1231 = vmatpush1.msra.mxu0 0.0
    %1232 = vmatprep.subr.mxu0 0.0
    %1233 = vmatpush1.msra.mxu0 0.0
    %1234 = vmatprep.subr.mxu0 0.0
    %1235 = vmatpush1.msra.mxu0 0.0
    %1236 = vmatprep.subr.mxu0 0.0
    %1237 = vmatpush1.msra.mxu0 0.0
    %1238 = vmatprep.subr.mxu0 0.0
    %1239 = vmatpush1.msra.mxu0 0.0
    %1240 = vmatprep.subr.mxu0 0.0
    %1241 = vmatpush1.msra.mxu0 0.0
    %1242 = vmatprep.subr.mxu0 0.0
    %1243 = vmatpush1.msra.mxu0 0.0
    %1244 = vmatprep.subr.mxu0 0.0
    %1245 = vmatpush1.msra.mxu0 0.0
    %1246 = vmatprep.subr.mxu0 0.0
    %1247 = vmatpush1.msra.mxu0 0.0
    %1248 = vmatprep.subr.mxu0 0.0
    %1249 = vmatpush1.msra.mxu0 0.0
    %1250 = vmatprep.subr.mxu0 0.0
    %1251 = vmatpush1.msra.mxu0 0.0
    %1252 = vmatprep.subr.mxu0 0.0
    %1253 = vmatpush1.msra.mxu0 0.0
    %1254 = vmatprep.subr.mxu0 0.0
    %1255 = vmatpush1.msra.mxu0 0.0
    %1256 = vmatprep.subr.mxu0 0.0
    %1257 = vmatpush1.msra.mxu0 0.0
    %1258 = vmatprep.subr.mxu0 0.0
    %1259 = vmatpush1.msra.mxu0 0.0
    %1260 = vmatprep.subr.mxu0 0.0
    %1261 = vmatpush1.msra.mxu0 0.0
    %1262 = vmatprep.subr.mxu0 0.0
    %1263 = vmatpush1.msra.mxu0 0.0
    %1264 = vmatprep.subr.mxu0 0.0
    %1265 = vmatpush1.msra.mxu0 0.0
    %1266 = vmatprep.subr.mxu0 0.0
    %1267 = vmatpush1.msra.mxu0 0.0
    %1268 = vmatprep.subr.mxu0 0.0
    %1269 = vmatpush1.msra.mxu0 0.0
    %1270 = vmatprep.subr.mxu0 0.0
    %1271 = vmatpush1.msra.mxu0 0.0
    %1272 = vmatprep.subr.mxu0 0.0
    %1273 = vmatpush1.msra.mxu0 0.0
    %1274 = vmatprep.subr.mxu0 0.0
    %1275 = vmatpush1.msra.mxu0 0.0
    %1276 = vmatprep.subr.mxu0 0.0
    %1277 = vmatpush1.msra.mxu0 0.0
    %1278 = vmatprep.subr.mxu0 0.0
    %1279 = vmatpush1.msra.mxu0 0.0
    %1280 = vmatprep.mubr.f32.mxu0 0.0
    %1281 = vmatmul.mubr.f32.gmra.mrb[0].mxu0 %v1214
    %v1282 = vpop.f32.mrb[0].mxu0
    %v1283 = vadd.f32 %v1189, %v1282
    %v1284 = vpop.f32.mrb[0].mxu0
    %1285 = vdwg.mxu0
    %v1286 = vadd.f32 %v1283, %v274
    %v1287 = vxor.u32 %v1286, 2147483648
    %v1288 = vmul.f32 %v1287, 1.442695
    %v1289 = vpow.pop %v1288
    %v1290 = vadd.f32 %v1289, 1.0
    %v1291 = vrcp.pop %v1290
    %v1292 = vmul.f32 1.0, %v1291
    %v1293 = vtanh.pop %v1286
    %v1294 = vmul.f32 %v1292, %v1102
    %1296 = vrot.lane.b32.xlu0 %v1293, 64
    %v1297 = vpop.permute.xlu0 %1296
    %v1299 = vmul.f32 %v1292, %v1297
    %1301 = vrot.lane.b32.xlu0 %v1299, 32
    %v1302 = vpop.permute.xlu0 %1301
    %v1304 = vadd.f32 %v1294, %v1302
    %v1305 = vtanh.pop %v1304
    %1307 = vrot.lane.b32.xlu0 %v1305, 64
    %v1308 = vpop.permute.xlu0 %1307
    %v1310 = vmul.f32 %v1292, %v1308
    %v1311 = vld [vmem:[#allocation2 + $0x6] sm:$0x1]
    %v1312 = vld [vmem:[#allocation2 + $0xe] sm:$0x1]
    %v1313 = vld [vmem:[#allocation2 + $0x16] sm:$0x1]
    %v1314 = vld [vmem:[#allocation2 + $0x1e] sm:$0x1]
    %v1315 = vld [vmem:[#allocation2 + $0x26] sm:$0x1]
    %v1316 = vld [vmem:[#allocation2 + $0x2e] sm:$0x1]
    %v1317 = vld [vmem:[#allocation2 + $0x36] sm:$0x1]
    %v1318 = vld [vmem:[#allocation2 + $0x3e] sm:$0x1]
    %1320 = vrot.lane.b32.xlu0 %v1310, 32
    %v1321 = vpop.permute.xlu0 %1320
    %v1322 = vsel %vm94, %v1321, 0
    %1324 = vmatprep.subr.mxu0 0.0
    %1325 = vmatpush1.msra.mxu0 %v81
    %1326 = vmatprep.subr.mxu0 0.0
    %1327 = vmatpush1.msra.mxu0 %v82
    %1328 = vmatprep.subr.mxu0 0.0
    %1329 = vmatpush1.msra.mxu0 %v83
    %1330 = vmatprep.subr.mxu0 0.0
    %1331 = vmatpush1.msra.mxu0 %v84
    %1332 = vmatprep.subr.mxu0 0.0
    %1333 = vmatpush1.msra.mxu0 0.0
    %1334 = vmatprep.subr.mxu0 0.0
    %1335 = vmatpush1.msra.mxu0 0.0
    %1336 = vmatprep.subr.mxu0 0.0
    %1337 = vmatpush1.msra.mxu0 0.0
    %1338 = vmatprep.subr.mxu0 0.0
    %1339 = vmatpush1.msra.mxu0 0.0
    %1340 = vmatprep.subr.mxu0 0.0
    %1341 = vmatpush1.msra.mxu0 0.0
    %1342 = vmatprep.subr.mxu0 0.0
    %1343 = vmatpush1.msra.mxu0 0.0
    %1344 = vmatprep.subr.mxu0 0.0
    %1345 = vmatpush1.msra.mxu0 0.0
    %1346 = vmatprep.subr.mxu0 0.0
    %1347 = vmatpush1.msra.mxu0 0.0
    %1348 = vmatprep.subr.mxu0 0.0
    %1349 = vmatpush1.msra.mxu0 0.0
    %1350 = vmatprep.subr.mxu0 0.0
    %1351 = vmatpush1.msra.mxu0 0.0
    %1352 = vmatprep.subr.mxu0 0.0
    %1353 = vmatpush1.msra.mxu0 0.0
    %1354 = vmatprep.subr.mxu0 0.0
    %1355 = vmatpush1.msra.mxu0 0.0
    %1356 = vmatprep.subr.mxu0 0.0
    %1357 = vmatpush1.msra.mxu0 0.0
    %1358 = vmatprep.subr.mxu0 0.0
    %1359 = vmatpush1.msra.mxu0 0.0
    %1360 = vmatprep.subr.mxu0 0.0
    %1361 = vmatpush1.msra.mxu0 0.0
    %1362 = vmatprep.subr.mxu0 0.0
    %1363 = vmatpush1.msra.mxu0 0.0
    %1364 = vmatprep.subr.mxu0 0.0
    %1365 = vmatpush1.msra.mxu0 0.0
    %1366 = vmatprep.subr.mxu0 0.0
    %1367 = vmatpush1.msra.mxu0 0.0
    %1368 = vmatprep.subr.mxu0 0.0
    %1369 = vmatpush1.msra.mxu0 0.0
    %1370 = vmatprep.subr.mxu0 0.0
    %1371 = vmatpush1.msra.mxu0 0.0
    %1372 = vmatprep.subr.mxu0 0.0
    %1373 = vmatpush1.msra.mxu0 0.0
    %1374 = vmatprep.subr.mxu0 0.0
    %1375 = vmatpush1.msra.mxu0 0.0
    %1376 = vmatprep.subr.mxu0 0.0
    %1377 = vmatpush1.msra.mxu0 0.0
    %1378 = vmatprep.subr.mxu0 0.0
    %1379 = vmatpush1.msra.mxu0 0.0
    %1380 = vmatprep.subr.mxu0 0.0
    %1381 = vmatpush1.msra.mxu0 0.0
    %1382 = vmatprep.subr.mxu0 0.0
    %1383 = vmatpush1.msra.mxu0 0.0
    %1384 = vmatprep.subr.mxu0 0.0
    %1385 = vmatpush1.msra.mxu0 0.0
    %1386 = vmatprep.subr.mxu0 0.0
    %1387 = vmatpush1.msra.mxu0 0.0
    %1388 = vmatprep.mubr.f32.mxu0 0.0
    %1389 = vmatmul.mubr.f32.gmra.mrb[0].mxu0 %v1322
    %v1390 = vpop.f32.mrb[0].mxu0
    %v1391 = vadd.f32 0.0, %v1390
    %v1392 = vpop.f32.mrb[0].mxu0
    %1393 = vdwg.mxu0
    %v1402 = vrot.slane %v1312, 7
    %v1403 = vsel %vm177, %v1402, %v1311
    %v1404 = vrot.slane %v1313, 6
    %v1405 = vsel %vm180, %v1404, %v1403
    %v1406 = vrot.slane %v1314, 5
    %v1407 = vsel %vm183, %v1406, %v1405
    %v1408 = vrot.slane %v1315, 4
    %v1409 = vsel %vm186, %v1408, %v1407
    %v1410 = vrot.slane %v1316, 3
    %v1411 = vsel %vm189, %v1410, %v1409
    %v1412 = vrot.slane %v1317, 2
    %v1413 = vsel %vm192, %v1412, %v1411
    %v1414 = vrot.slane %v1318, 1
    %v1415 = vsel %vm195, %v1414, %v1413
    %v1416 = vsel %vm197, %v1415, 0
    %1418 = vmatprep.subr.mxu0 0.0
    %1419 = vmatpush1.msra.mxu0 %v79
    %1420 = vmatprep.subr.mxu0 0.0
    %1421 = vmatpush1.msra.mxu0 %v80
    %1422 = vmatprep.subr.mxu0 0.0
    %1423 = vmatpush1.msra.mxu0 0.0
    %1424 = vmatprep.subr.mxu0 0.0
    %1425 = vmatpush1.msra.mxu0 0.0
    %1426 = vmatprep.subr.mxu0 0.0
    %1427 = vmatpush1.msra.mxu0 0.0
    %1428 = vmatprep.subr.mxu0 0.0
    %1429 = vmatpush1.msra.mxu0 0.0
    %1430 = vmatprep.subr.mxu0 0.0
    %1431 = vmatpush1.msra.mxu0 0.0
    %1432 = vmatprep.subr.mxu0 0.0
    %1433 = vmatpush1.msra.mxu0 0.0
    %1434 = vmatprep.subr.mxu0 0.0
    %1435 = vmatpush1.msra.mxu0 0.0
    %1436 = vmatprep.subr.mxu0 0.0
    %1437 = vmatpush1.msra.mxu0 0.0
    %1438 = vmatprep.subr.mxu0 0.0
    %1439 = vmatpush1.msra.mxu0 0.0
    %1440 = vmatprep.subr.mxu0 0.0
    %1441 = vmatpush1.msra.mxu0 0.0
    %1442 = vmatprep.subr.mxu0 0.0
    %1443 = vmatpush1.msra.mxu0 0.0
    %1444 = vmatprep.subr.mxu0 0.0
    %1445 = vmatpush1.msra.mxu0 0.0
    %1446 = vmatprep.subr.mxu0 0.0
    %1447 = vmatpush1.msra.mxu0 0.0
    %1448 = vmatprep.subr.mxu0 0.0
    %1449 = vmatpush1.msra.mxu0 0.0
    %1450 = vmatprep.subr.mxu0 0.0
    %1451 = vmatpush1.msra.mxu0 0.0
    %1452 = vmatprep.subr.mxu0 0.0
    %1453 = vmatpush1.msra.mxu0 0.0
    %1454 = vmatprep.subr.mxu0 0.0
    %1455 = vmatpush1.msra.mxu0 0.0
    %1456 = vmatprep.subr.mxu0 0.0
    %1457 = vmatpush1.msra.mxu0 0.0
    %1458 = vmatprep.subr.mxu0 0.0
    %1459 = vmatpush1.msra.mxu0 0.0
    %1460 = vmatprep.subr.mxu0 0.0
    %1461 = vmatpush1.msra.mxu0 0.0
    %1462 = vmatprep.subr.mxu0 0.0
    %1463 = vmatpush1.msra.mxu0 0.0
    %1464 = vmatprep.subr.mxu0 0.0
    %1465 = vmatpush1.msra.mxu0 0.0
    %1466 = vmatprep.subr.mxu0 0.0
    %1467 = vmatpush1.msra.mxu0 0.0
    %1468 = vmatprep.subr.mxu0 0.0
    %1469 = vmatpush1.msra.mxu0 0.0
    %1470 = vmatprep.subr.mxu0 0.0
    %1471 = vmatpush1.msra.mxu0 0.0
    %1472 = vmatprep.subr.mxu0 0.0
    %1473 = vmatpush1.msra.mxu0 0.0
    %1474 = vmatprep.subr.mxu0 0.0
    %1475 = vmatpush1.msra.mxu0 0.0
    %1476 = vmatprep.subr.mxu0 0.0
    %1477 = vmatpush1.msra.mxu0 0.0
    %1478 = vmatprep.subr.mxu0 0.0
    %1479 = vmatpush1.msra.mxu0 0.0
    %1480 = vmatprep.subr.mxu0 0.0
    %1481 = vmatpush1.msra.mxu0 0.0
    %1482 = vmatprep.mubr.f32.mxu0 0.0
    %1483 = vmatmul.mubr.f32.gmra.mrb[0].mxu0 %v1416
    %v1484 = vpop.f32.mrb[0].mxu0
    %v1485 = vadd.f32 %v1391, %v1484
    %v1486 = vpop.f32.mrb[0].mxu0
    %1487 = vdwg.mxu0
    %v1488 = vadd.f32 %v1485, %v274
    %v1489 = vxor.u32 %v1488, 2147483648
    %v1490 = vmul.f32 %v1489, 1.442695
    %v1491 = vpow.pop %v1490
    %v1492 = vadd.f32 %v1491, 1.0
    %v1493 = vrcp.pop %v1492
    %v1494 = vmul.f32 1.0, %v1493
    %v1495 = vtanh.pop %v1488
    %v1496 = vmul.f32 %v1494, %v1304
    %1498 = vrot.lane.b32.xlu0 %v1495, 64
    %v1499 = vpop.permute.xlu0 %1498
    %v1501 = vmul.f32 %v1494, %v1499
    %1503 = vrot.lane.b32.xlu0 %v1501, 32
    %v1504 = vpop.permute.xlu0 %1503
    %v1506 = vadd.f32 %v1496, %v1504
    %v1507 = vtanh.pop %v1506
    %1509 = vrot.lane.b32.xlu0 %v1507, 64
    %v1510 = vpop.permute.xlu0 %1509
    %v1512 = vmul.f32 %v1494, %v1510
    %v1513 = vld [vmem:[#allocation2 + $0x7] sm:$0x1]
    %v1514 = vld [vmem:[#allocation2 + $0xf] sm:$0x1]
    %v1515 = vld [vmem:[#allocation2 + $0x17] sm:$0x1]
    %v1516 = vld [vmem:[#allocation2 + $0x1f] sm:$0x1]
    %v1517 = vld [vmem:[#allocation2 + $0x27] sm:$0x1]
    %v1518 = vld [vmem:[#allocation2 + $0x2f] sm:$0x1]
    %v1519 = vld [vmem:[#allocation2 + $0x37] sm:$0x1]
    %v1520 = vld [vmem:[#allocation2 + $0x3f] sm:$0x1]
    %1522 = vrot.lane.b32.xlu0 %v1512, 32
    %v1523 = vpop.permute.xlu0 %1522
    %v1524 = vsel %vm94, %v1523, 0
    %1526 = vmatprep.subr.mxu0 0.0
    %1527 = vmatpush1.msra.mxu0 %v81
    %1528 = vmatprep.subr.mxu0 0.0
    %1529 = vmatpush1.msra.mxu0 %v82
    %1530 = vmatprep.subr.mxu0 0.0
    %1531 = vmatpush1.msra.mxu0 %v83
    %1532 = vmatprep.subr.mxu0 0.0
    %1533 = vmatpush1.msra.mxu0 %v84
    %1534 = vmatprep.subr.mxu0 0.0
    %1535 = vmatpush1.msra.mxu0 0.0
    %1536 = vmatprep.subr.mxu0 0.0
    %1537 = vmatpush1.msra.mxu0 0.0
    %1538 = vmatprep.subr.mxu0 0.0
    %1539 = vmatpush1.msra.mxu0 0.0
    %1540 = vmatprep.subr.mxu0 0.0
    %1541 = vmatpush1.msra.mxu0 0.0
    %1542 = vmatprep.subr.mxu0 0.0
    %1543 = vmatpush1.msra.mxu0 0.0
    %1544 = vmatprep.subr.mxu0 0.0
    %1545 = vmatpush1.msra.mxu0 0.0
    %1546 = vmatprep.subr.mxu0 0.0
    %1547 = vmatpush1.msra.mxu0 0.0
    %1548 = vmatprep.subr.mxu0 0.0
    %1549 = vmatpush1.msra.mxu0 0.0
    %1550 = vmatprep.subr.mxu0 0.0
    %1551 = vmatpush1.msra.mxu0 0.0
    %1552 = vmatprep.subr.mxu0 0.0
    %1553 = vmatpush1.msra.mxu0 0.0
    %1554 = vmatprep.subr.mxu0 0.0
    %1555 = vmatpush1.msra.mxu0 0.0
    %1556 = vmatprep.subr.mxu0 0.0
    %1557 = vmatpush1.msra.mxu0 0.0
    %1558 = vmatprep.subr.mxu0 0.0
    %1559 = vmatpush1.msra.mxu0 0.0
    %1560 = vmatprep.subr.mxu0 0.0
    %1561 = vmatpush1.msra.mxu0 0.0
    %1562 = vmatprep.subr.mxu0 0.0
    %1563 = vmatpush1.msra.mxu0 0.0
    %1564 = vmatprep.subr.mxu0 0.0
    %1565 = vmatpush1.msra.mxu0 0.0
    %1566 = vmatprep.subr.mxu0 0.0
    %1567 = vmatpush1.msra.mxu0 0.0
    %1568 = vmatprep.subr.mxu0 0.0
    %1569 = vmatpush1.msra.mxu0 0.0
    %1570 = vmatprep.subr.mxu0 0.0
    %1571 = vmatpush1.msra.mxu0 0.0
    %1572 = vmatprep.subr.mxu0 0.0
    %1573 = vmatpush1.msra.mxu0 0.0
    %1574 = vmatprep.subr.mxu0 0.0
    %1575 = vmatpush1.msra.mxu0 0.0
    %1576 = vmatprep.subr.mxu0 0.0
    %1577 = vmatpush1.msra.mxu0 0.0
    %1578 = vmatprep.subr.mxu0 0.0
    %1579 = vmatpush1.msra.mxu0 0.0
    %1580 = vmatprep.subr.mxu0 0.0
    %1581 = vmatpush1.msra.mxu0 0.0
    %1582 = vmatprep.subr.mxu0 0.0
    %1583 = vmatpush1.msra.mxu0 0.0
    %1584 = vmatprep.subr.mxu0 0.0
    %1585 = vmatpush1.msra.mxu0 0.0
    %1586 = vmatprep.subr.mxu0 0.0
    %1587 = vmatpush1.msra.mxu0 0.0
    %1588 = vmatprep.subr.mxu0 0.0
    %1589 = vmatpush1.msra.mxu0 0.0
    %1590 = vmatprep.mubr.f32.mxu0 0.0
    %1591 = vmatmul.mubr.f32.gmra.mrb[0].mxu0 %v1524
    %v1592 = vpop.f32.mrb[0].mxu0
    %v1593 = vadd.f32 0.0, %v1592
    %v1594 = vpop.f32.mrb[0].mxu0
    %1595 = vdwg.mxu0
    %v1604 = vrot.slane %v1514, 7
    %v1605 = vsel %vm177, %v1604, %v1513
    %v1606 = vrot.slane %v1515, 6
    %v1607 = vsel %vm180, %v1606, %v1605
    %v1608 = vrot.slane %v1516, 5
    %v1609 = vsel %vm183, %v1608, %v1607
    %v1610 = vrot.slane %v1517, 4
    %v1611 = vsel %vm186, %v1610, %v1609
    %v1612 = vrot.slane %v1518, 3
    %v1613 = vsel %vm189, %v1612, %v1611
    %v1614 = vrot.slane %v1519, 2
    %v1615 = vsel %vm192, %v1614, %v1613
    %v1616 = vrot.slane %v1520, 1
    %v1617 = vsel %vm195, %v1616, %v1615
    %v1618 = vsel %vm197, %v1617, 0
    %1620 = vmatprep.subr.mxu0 0.0
    %1621 = vmatpush1.msra.mxu0 %v79
    %1622 = vmatprep.subr.mxu0 0.0
    %1623 = vmatpush1.msra.mxu0 %v80
    %1624 = vmatprep.subr.mxu0 0.0
    %1625 = vmatpush1.msra.mxu0 0.0
    %1626 = vmatprep.subr.mxu0 0.0
    %1627 = vmatpush1.msra.mxu0 0.0
    %1628 = vmatprep.subr.mxu0 0.0
    %1629 = vmatpush1.msra.mxu0 0.0
    %1630 = vmatprep.subr.mxu0 0.0
    %1631 = vmatpush1.msra.mxu0 0.0
    %1632 = vmatprep.subr.mxu0 0.0
    %1633 = vmatpush1.msra.mxu0 0.0
    %1634 = vmatprep.subr.mxu0 0.0
    %1635 = vmatpush1.msra.mxu0 0.0
    %1636 = vmatprep.subr.mxu0 0.0
    %1637 = vmatpush1.msra.mxu0 0.0
    %1638 = vmatprep.subr.mxu0 0.0
    %1639 = vmatpush1.msra.mxu0 0.0
    %1640 = vmatprep.subr.mxu0 0.0
    %1641 = vmatpush1.msra.mxu0 0.0
    %1642 = vmatprep.subr.mxu0 0.0
    %1643 = vmatpush1.msra.mxu0 0.0
    %1644 = vmatprep.subr.mxu0 0.0
    %1645 = vmatpush1.msra.mxu0 0.0
    %1646 = vmatprep.subr.mxu0 0.0
    %1647 = vmatpush1.msra.mxu0 0.0
    %1648 = vmatprep.subr.mxu0 0.0
    %1649 = vmatpush1.msra.mxu0 0.0
    %1650 = vmatprep.subr.mxu0 0.0
    %1651 = vmatpush1.msra.mxu0 0.0
    %1652 = vmatprep.subr.mxu0 0.0
    %1653 = vmatpush1.msra.mxu0 0.0
    %1654 = vmatprep.subr.mxu0 0.0
    %1655 = vmatpush1.msra.mxu0 0.0
    %1656 = vmatprep.subr.mxu0 0.0
    %1657 = vmatpush1.msra.mxu0 0.0
    %1658 = vmatprep.subr.mxu0 0.0
    %1659 = vmatpush1.msra.mxu0 0.0
    %1660 = vmatprep.subr.mxu0 0.0
    %1661 = vmatpush1.msra.mxu0 0.0
    %1662 = vmatprep.subr.mxu0 0.0
    %1663 = vmatpush1.msra.mxu0 0.0
    %1664 = vmatprep.subr.mxu0 0.0
    %1665 = vmatpush1.msra.mxu0 0.0
    %1666 = vmatprep.subr.mxu0 0.0
    %1667 = vmatpush1.msra.mxu0 0.0
    %1668 = vmatprep.subr.mxu0 0.0
    %1669 = vmatpush1.msra.mxu0 0.0
    %1670 = vmatprep.subr.mxu0 0.0
    %1671 = vmatpush1.msra.mxu0 0.0
    %1672 = vmatprep.subr.mxu0 0.0
    %1673 = vmatpush1.msra.mxu0 0.0
    %1674 = vmatprep.subr.mxu0 0.0
    %1675 = vmatpush1.msra.mxu0 0.0
    %1676 = vmatprep.subr.mxu0 0.0
    %1677 = vmatpush1.msra.mxu0 0.0
    %1678 = vmatprep.subr.mxu0 0.0
    %1679 = vmatpush1.msra.mxu0 0.0
    %1680 = vmatprep.subr.mxu0 0.0
    %1681 = vmatpush1.msra.mxu0 0.0
    %1682 = vmatprep.subr.mxu0 0.0
    %1683 = vmatpush1.msra.mxu0 0.0
    %1684 = vmatprep.mubr.f32.mxu0 0.0
    %1685 = vmatmul.mubr.f32.gmra.mrb[0].mxu0 %v1618
    %v1686 = vpop.f32.mrb[0].mxu0
    %v1687 = vadd.f32 %v1593, %v1686
    %v1688 = vpop.f32.mrb[0].mxu0
    %1689 = vdwg.mxu0
    %v1690 = vadd.f32 %v1687, %v274
    %v1691 = vxor.u32 %v1690, 2147483648
    %v1692 = vmul.f32 %v1691, 1.442695
    %v1693 = vpow.pop %v1692
    %v1694 = vadd.f32 %v1693, 1.0
    %v1695 = vrcp.pop %v1694
    %v1696 = vmul.f32 1.0, %v1695
    %v1697 = vtanh.pop %v1690
    %v1698 = vmul.f32 %v1696, %v1506
    %1700 = vrot.lane.b32.xlu0 %v1697, 64
    %v1701 = vpop.permute.xlu0 %1700
    %v1703 = vmul.f32 %v1696, %v1701
    %1705 = vrot.lane.b32.xlu0 %v1703, 32
    %v1706 = vpop.permute.xlu0 %1705
    %v1708 = vadd.f32 %v1698, %v1706
    %v1709 = vtanh.pop %v1708
    %1711 = vrot.lane.b32.xlu0 %v1709, 64
    %v1712 = vpop.permute.xlu0 %1711
    %v1714 = vmul.f32 %v1696, %v1712
    %v1715 = vld [vmem:[#allocation8] sm:$0xff]
    %v1716 = vld [vmem:[#allocation8 + $0x8] sm:$0xff]
    %v1717 = vld [vmem:[#allocation8 + $0x10] sm:$0xff]
    %v1718 = vld [vmem:[#allocation8 + $0x18] sm:$0xff]
    %v1719 = vld [vmem:[%s5] sm:$0x1]
    %v1721 = vlaneseq
    %v1722 = vshrl.u32 %v1721, 7
    %v1723 = vsub.s32 0, %v1722
    %v1724 = vrot.slane %v1719, %v1723
    %1727 = vrot.lane.b32.xlu0 %v1714, 32
    %v1728 = vpop.permute.xlu0 %1727
    %v1729 = vsel %vm94, %v1728, 0
    %1731 = vmatprep.subr.mxu0 0.0
    %1732 = vmatpush1.msra.mxu0 %v1715
    %1733 = vmatprep.subr.mxu0 0.0
    %1734 = vmatpush1.msra.mxu0 %v1716
    %1735 = vmatprep.subr.mxu0 0.0
    %1736 = vmatpush1.msra.mxu0 %v1717
    %1737 = vmatprep.subr.mxu0 0.0
    %1738 = vmatpush1.msra.mxu0 %v1718
    %1739 = vmatprep.subr.mxu0 0.0
    %1740 = vmatpush1.msra.mxu0 0.0
    %1741 = vmatprep.subr.mxu0 0.0
    %1742 = vmatpush1.msra.mxu0 0.0
    %1743 = vmatprep.subr.mxu0 0.0
    %1744 = vmatpush1.msra.mxu0 0.0
    %1745 = vmatprep.subr.mxu0 0.0
    %1746 = vmatpush1.msra.mxu0 0.0
    %1747 = vmatprep.subr.mxu0 0.0
    %1748 = vmatpush1.msra.mxu0 0.0
    %1749 = vmatprep.subr.mxu0 0.0
    %1750 = vmatpush1.msra.mxu0 0.0
    %1751 = vmatprep.subr.mxu0 0.0
    %1752 = vmatpush1.msra.mxu0 0.0
    %1753 = vmatprep.subr.mxu0 0.0
    %1754 = vmatpush1.msra.mxu0 0.0
    %1755 = vmatprep.subr.mxu0 0.0
    %1756 = vmatpush1.msra.mxu0 0.0
    %1757 = vmatprep.subr.mxu0 0.0
    %1758 = vmatpush1.msra.mxu0 0.0
    %1759 = vmatprep.subr.mxu0 0.0
    %1760 = vmatpush1.msra.mxu0 0.0
    %1761 = vmatprep.subr.mxu0 0.0
    %1762 = vmatpush1.msra.mxu0 0.0
    %1763 = vmatprep.subr.mxu0 0.0
    %1764 = vmatpush1.msra.mxu0 0.0
    %1765 = vmatprep.subr.mxu0 0.0
    %1766 = vmatpush1.msra.mxu0 0.0
    %1767 = vmatprep.subr.mxu0 0.0
    %1768 = vmatpush1.msra.mxu0 0.0
    %1769 = vmatprep.subr.mxu0 0.0
    %1770 = vmatpush1.msra.mxu0 0.0
    %1771 = vmatprep.subr.mxu0 0.0
    %1772 = vmatpush1.msra.mxu0 0.0
    %1773 = vmatprep.subr.mxu0 0.0
    %1774 = vmatpush1.msra.mxu0 0.0
    %1775 = vmatprep.subr.mxu0 0.0
    %1776 = vmatpush1.msra.mxu0 0.0
    %1777 = vmatprep.subr.mxu0 0.0
    %1778 = vmatpush1.msra.mxu0 0.0
    %1779 = vmatprep.subr.mxu0 0.0
    %1780 = vmatpush1.msra.mxu0 0.0
    %1781 = vmatprep.subr.mxu0 0.0
    %1782 = vmatpush1.msra.mxu0 0.0
    %1783 = vmatprep.subr.mxu0 0.0
    %1784 = vmatpush1.msra.mxu0 0.0
    %1785 = vmatprep.subr.mxu0 0.0
    %1786 = vmatpush1.msra.mxu0 0.0
    %1787 = vmatprep.subr.mxu0 0.0
    %1788 = vmatpush1.msra.mxu0 0.0
    %1789 = vmatprep.subr.mxu0 0.0
    %1790 = vmatpush1.msra.mxu0 0.0
    %1791 = vmatprep.subr.mxu0 0.0
    %1792 = vmatpush1.msra.mxu0 0.0
    %1793 = vmatprep.subr.mxu0 0.0
    %1794 = vmatpush1.msra.mxu0 0.0
    %1795 = vmatprep.mubr.f32.mxu0 0.0
    %1796 = vmatmul.mubr.f32.gmra.mrb[0].mxu0 %v1729
    %v1797 = vpop.f32.mrb[0].mxu0
    %v1798 = vadd.f32 %v1724, %v1797
    %v1799 = vpop.f32.mrb[0].mxu0
    %1800 = vdwg.mxu0
    %1801 = vst [vmem:[#allocation10] sm:$0xff] %v1798
    // Predicated region
    $region42: #{tpu_custom_call.1} parent=1 // pred_check
      _
    $region43: #{tpu_custom_call.1} parent=1 // pred_check_branch
      %1803 = sbr.rel (0) target = $region45
    $region44: #{tpu_custom_call.1} parent=1 // pred_region
      %s1805 = ssub.s32 128, 128
      %1806 = vsyncadd [#allocation4], %s1805
      %s1808 = sshll.u32 [#allocation10], 4
      %s1809 = int_to_ptr.vmem [resolvable:$true] %s1808
      %1811 = dma.vmem_to_hbm [thread:$0]  %s1809, 128, %s6, [#allocation4]
    $region45: #{tpu_custom_call.1} parent=1 // pred_fallthru
      _
    // Predicated region
    $region46: #{tpu_custom_call.1} parent=1 // pred_check
      _
    $region47: #{tpu_custom_call.1} parent=1 // pred_check_branch
      %1813 = sbr.rel (0) target = $region49
    $region48: #{tpu_custom_call.1} parent=1 // pred_region
      %1814 = dma.done [#allocation4], 128
    $region49: #{tpu_custom_call.1} parent=1 // pred_fallthru
      _
    %1815 = vsyncpa [#allocation3], 1
    %1816 = vsyncpa [#allocation6], 1
    %1817 = vsyncpa [#allocation9], 1
    %1818 = vsyncpa [#allocation4], 1

</llo_original>
